<compile_context>
chip_gen: v5e
topology: v5e:2x2
jax: 0.10.0
libtpu: 0.0.40
codegen_flags: <defaults>
</compile_context>

<pallas_src>
import jax
import jax.numpy as jnp
from jax.experimental import pallas as pl
from jax.experimental.pallas import tpu as pltpu

EPS = 1e-5  # PyTorch BatchNorm1d default


# ---------------------------------------------------------------------------
# Fused Pallas kernel: the entire `features` stack for one sample.
# ---------------------------------------------------------------------------
def fused_features_kernel(x_ref,
                          w0, b0, w1, b1, w2, b2, w3, b3, w4, b4, w5, b5,
                          o_ref,
                          pad0, pad1, pad2, pad3, pad4, pad5):
    f32 = jnp.float32

    def write_padded(pad_ref, a):
        # pad_ref: (n+2, C) VMEM scratch; rows 0 and n+1 are the conv padding.
        n, c = a.shape
        zero = jnp.zeros((1, c), f32)
        pad_ref[0:1, :] = zero
        pad_ref[n + 1:n + 2, :] = zero
        pad_ref[1:n + 1, :] = a

    def conv3(pad_ref, w_ref, b_ref):
        # 3-tap conv as 3 shifted MXU matmuls; BN scale already folded in w.
        n = pad_ref.shape[0] - 2
        cout = w_ref.shape[-1]
        acc = jnp.zeros((n, cout), f32)
        for k in range(3):
            acc = acc + jnp.dot(pad_ref[k:k + n, :], w_ref[k],
                                preferred_element_type=f32)
        return jnp.maximum(acc + b_ref[...], 0.0)

    def conv3_cin1(pad_ref, w_ref, b_ref):
        # Cin == 1: K=1 matmuls are pathological MXU usage -> VPU broadcast FMA.
        # pad_ref: (n+2, 1), w_ref: (3, 1, Cout), b_ref: (1, Cout).
        n = pad_ref.shape[0] - 2
        cout = w_ref.shape[-1]
        acc = jnp.zeros((n, cout), f32)
        for k in range(3):
            acc = acc + pad_ref[k:k + n, :] * w_ref[k]   # (n,1)*(1,Cout)
        return jnp.maximum(acc + b_ref[...], 0.0)

    def conv3_pool2(pad_ref, w_ref, b_ref):
        # Conv + MaxPool1d(2) fused: even/odd conv output rows via stride-2
        # reads of the padded input, max'ed before the monotone bias+ReLU.
        n = pad_ref.shape[0] - 2
        half = n // 2
        cout = w_ref.shape[-1]
        acc_e = jnp.zeros((half, cout), f32)
        acc_o = jnp.zeros((half, cout), f32)
        for k in range(3):
            acc_e = acc_e + jnp.dot(pad_ref[pl.ds(k, half, stride=2), :],
                                    w_ref[k], preferred_element_type=f32)
            acc_o = acc_o + jnp.dot(pad_ref[pl.ds(k + 1, half, stride=2), :],
                                    w_ref[k], preferred_element_type=f32)
        return jnp.maximum(jnp.maximum(acc_e, acc_o) + b_ref[...], 0.0)

    # block 1: conv(1->32), conv(32->32) + pool    (Dropout == identity, eval)
    write_padded(pad0, x_ref[...])
    a = conv3_cin1(pad0, w0, b0)        # (L, 32)
    write_padded(pad1, a)
    a = conv3_pool2(pad1, w1, b1)       # (L/2, 32)
    # block 2: conv(32->64), conv(64->64) + pool
    write_padded(pad2, a)
    a = conv3(pad2, w2, b2)             # (L/2, 64)
    write_padded(pad3, a)
    a = conv3_pool2(pad3, w3, b3)       # (L/4, 64)
    # block 3: conv(64->128) + pool
    write_padded(pad4, a)
    a = conv3_pool2(pad4, w4, b4)       # (L/8, 128)
    # block 4: conv(128->256) + pool
    write_padded(pad5, a)
    a = conv3_pool2(pad5, w5, b5)       # (L/16, 256)
    o_ref[...] = a.astype(o_ref.dtype)


# ---------------------------------------------------------------------------
# Wrapper
# ---------------------------------------------------------------------------
def _replicated_spec(shape):
    nd = len(shape)

    def idx(n):
        return (0,) * nd

    return pl.BlockSpec(shape, idx)


def cnn_1d_features(x_ncl, layer_params):
    """x_ncl: (N, 1, L) f32, L divisible by 16 -> (N, 256, L // 16) f32."""
    N, cin, L = x_ncl.shape
    assert cin == 1 and L % 16 == 0
    x_nlc = jnp.transpose(x_ncl, (0, 2, 1))              # NCL -> NLC

    flat_args = [x_nlc]
    in_specs = [pl.BlockSpec((None, L, 1), lambda n: (n, 0, 0))]
    for (w, b, _raw) in layer_params:
        flat_args += [w, b]
        in_specs += [_replicated_spec(w.shape), _replicated_spec(b.shape)]

    out_nlc = pl.pallas_call(
        fused_features_kernel,
        out_shape=jax.ShapeDtypeStruct((N, L // 16, 256), jnp.float32),
        grid=(N,),
        in_specs=in_specs,
        out_specs=pl.BlockSpec((None, L // 16, 256), lambda n: (n, 0, 0)),
        scratch_shapes=[                                  # padded activations
            pltpu.VMEM((L + 2, 1), jnp.float32),          # input (Cin=1)
            pltpu.VMEM((L + 2, 32), jnp.float32),
            pltpu.VMEM((L // 2 + 2, 32), jnp.float32),
            pltpu.VMEM((L // 2 + 2, 64), jnp.float32),
            pltpu.VMEM((L // 4 + 2, 64), jnp.float32),
            pltpu.VMEM((L // 8 + 2, 128), jnp.float32),
        ],
        compiler_params=pltpu.CompilerParams(
            dimension_semantics=("parallel",)),
    )(*flat_args)
    return jnp.transpose(out_nlc, (0, 2, 1))              # NLC -> NCL


# ---------------------------------------------------------------------------
# Parameter construction (deterministic, synthetic)
# ---------------------------------------------------------------------------
def make_conv_bn_params(key, cin, cout, k=3):
    k1, k2, k3, k4, k5, k6 = jax.random.split(key, 6)
    fan_in = cin * k
    w = jax.random.normal(k1, (cout, cin, k), jnp.float32) / jnp.sqrt(fan_in)
    b = 0.1 * jax.random.normal(k2, (cout,), jnp.float32)
    gamma = 1.0 + 0.1 * jax.random.normal(k3, (cout,), jnp.float32)
    beta = 0.1 * jax.random.normal(k4, (cout,), jnp.float32)
    rmean = 0.1 * jax.random.normal(k5, (cout,), jnp.float32)
    rvar = jnp.abs(1.0 + 0.1 * jax.random.normal(k6, (cout,), jnp.float32))
    # Eval-mode fold:  BN(Wx + b) = (W * s) x + ((b - mean) * s + beta)
    scale = gamma / jnp.sqrt(rvar + EPS)
    bias = (b - rmean) * scale + beta
    w_kio = jnp.transpose(w, (2, 1, 0))                   # (K, Cin, Cout)
    w_folded = w_kio * scale[None, None, :]               # BN scale into weights
    raw = (w, b, gamma, beta, rmean, rvar)
    return (w_folded, bias.reshape(1, cout), raw)


# ---------------------------------------------------------------------------
# Pure-JAX reference (for correctness check)
# ---------------------------------------------------------------------------
def ref_conv_bn_relu(x_ncl, raw):
    w, b, gamma, beta, rmean, rvar = raw
    y = jax.lax.conv_general_dilated(
        x_ncl, w, window_strides=(1,), padding=((1, 1),),
        dimension_numbers=("NCH", "OIH", "NCH"))
    y = y + b[None, :, None]
    y = (y - rmean[None, :, None]) / jnp.sqrt(rvar[None, :, None] + EPS)
    y = y * gamma[None, :, None] + beta[None, :, None]
    return jnp.maximum(y, 0.0)


def ref_maxpool2(x_ncl):
    N, C, L = x_ncl.shape
    return jnp.max(x_ncl.reshape(N, C, L // 2, 2), axis=-1)


def ref_features(x_ncl, params):
    x = ref_conv_bn_relu(x_ncl, params[0][2])
    x = ref_conv_bn_relu(x, params[1][2])
    x = ref_maxpool2(x)
    x = ref_conv_bn_relu(x, params[2][2])
    x = ref_conv_bn_relu(x, params[3][2])
    x = ref_maxpool2(x)
    x = ref_conv_bn_relu(x, params[4][2])
    x = ref_maxpool2(x)
    x = ref_conv_bn_relu(x, params[5][2])
    x = ref_maxpool2(x)
    return x


if __name__ == "__main__":
    key = jax.random.PRNGKey(0)
    kx, *pkeys = jax.random.split(key, 7)

    # Small shapes consistent with the module: (N, 1, L), L divisible by 16.
    N, L = 2, 64
    x = jax.random.normal(kx, (N, 1, L), jnp.float32)

    channel_plan = [(1, 32), (32, 32), (32, 64), (64, 64), (64, 128), (128, 256)]
    params = [make_conv_bn_params(k, ci, co)
              for k, (ci, co) in zip(pkeys, channel_plan)]

    out = jax.jit(lambda a: cnn_1d_features(a, params))(x)
    out = jax.block_until_ready(out)
    assert out.shape == (N, 256, L // 16), out.shape

    ref = ref_features(x, params)
    assert jnp.allclose(out, ref, rtol=1e-2, atol=1e-2), \
        float(jnp.max(jnp.abs(out - ref)))

    print("KERNEL_OK")
</pallas_src>

<mosaic_0001>
module attributes {stable_mosaic.version = 11 : i64} {
  func.func @fused_features_kernel(%arg0: i32, %arg1: memref<1x64x1xf32, #tpu.memory_space<vmem>>, %arg2: memref<3x1x32xf32, #tpu.memory_space<vmem>>, %arg3: memref<1x32xf32, #tpu.memory_space<vmem>>, %arg4: memref<3x32x32xf32, #tpu.memory_space<vmem>>, %arg5: memref<1x32xf32, #tpu.memory_space<vmem>>, %arg6: memref<3x32x64xf32, #tpu.memory_space<vmem>>, %arg7: memref<1x64xf32, #tpu.memory_space<vmem>>, %arg8: memref<3x64x64xf32, #tpu.memory_space<vmem>>, %arg9: memref<1x64xf32, #tpu.memory_space<vmem>>, %arg10: memref<3x64x128xf32, #tpu.memory_space<vmem>>, %arg11: memref<1x128xf32, #tpu.memory_space<vmem>>, %arg12: memref<3x128x256xf32, #tpu.memory_space<vmem>>, %arg13: memref<1x256xf32, #tpu.memory_space<vmem>>, %arg14: memref<1x4x256xf32, #tpu.memory_space<vmem>>, %arg15: memref<66x1xf32, #tpu.memory_space<vmem>>, %arg16: memref<66x32xf32, #tpu.memory_space<vmem>>, %arg17: memref<34x32xf32, #tpu.memory_space<vmem>>, %arg18: memref<34x64xf32, #tpu.memory_space<vmem>>, %arg19: memref<18x64xf32, #tpu.memory_space<vmem>>, %arg20: memref<10x128xf32, #tpu.memory_space<vmem>>) attributes {dimension_semantics = [#tpu.dimension_semantics<parallel>], iteration_bounds = array<i64: 2>, scalar_prefetch = 0 : i64, scratch_operands = 6 : i64, tpu.core_type = #tpu.core_type<tc>, window_params = [{transform_indices = @transform_0, window_bounds = array<i64: 1, 64, 1>}, {pipeline_mode = #tpu.pipeline_mode<synchronous>, transform_indices = @transform_1, window_bounds = array<i64: 3, 1, 32>}, {pipeline_mode = #tpu.pipeline_mode<synchronous>, transform_indices = @transform_2, window_bounds = array<i64: 1, 32>}, {pipeline_mode = #tpu.pipeline_mode<synchronous>, transform_indices = @transform_3, window_bounds = array<i64: 3, 32, 32>}, {pipeline_mode = #tpu.pipeline_mode<synchronous>, transform_indices = @transform_4, window_bounds = array<i64: 1, 32>}, {pipeline_mode = #tpu.pipeline_mode<synchronous>, transform_indices = @transform_5, window_bounds = array<i64: 3, 32, 64>}, {pipeline_mode = #tpu.pipeline_mode<synchronous>, transform_indices = @transform_6, window_bounds = array<i64: 1, 64>}, {pipeline_mode = #tpu.pipeline_mode<synchronous>, transform_indices = @transform_7, window_bounds = array<i64: 3, 64, 64>}, {pipeline_mode = #tpu.pipeline_mode<synchronous>, transform_indices = @transform_8, window_bounds = array<i64: 1, 64>}, {pipeline_mode = #tpu.pipeline_mode<synchronous>, transform_indices = @transform_9, window_bounds = array<i64: 3, 64, 128>}, {pipeline_mode = #tpu.pipeline_mode<synchronous>, transform_indices = @transform_10, window_bounds = array<i64: 1, 128>}, {pipeline_mode = #tpu.pipeline_mode<synchronous>, transform_indices = @transform_11, window_bounds = array<i64: 3, 128, 256>}, {pipeline_mode = #tpu.pipeline_mode<synchronous>, transform_indices = @transform_12, window_bounds = array<i64: 1, 256>}, {transform_indices = @transform_13, window_bounds = array<i64: 1, 4, 256>}]} {
    %c0 = arith.constant 0 : index
    %c0_0 = arith.constant 0 : index
    %c0_1 = arith.constant 0 : index
    %0 = vector.load %arg1[%c0, %c0_0, %c0_1] : memref<1x64x1xf32, #tpu.memory_space<vmem>>, vector<1x64x1xf32>
    %1 = vector.shape_cast %0 : vector<1x64x1xf32> to vector<64x1xf32>
    %cst = arith.constant 0.000000e+00 : f32
    %2 = vector.broadcast %cst : f32 to vector<1x1xf32>
    %c0_2 = arith.constant 0 : index
    %c0_3 = arith.constant 0 : index
    %3 = vector.load %arg15[%c0_2, %c0_3] : memref<66x1xf32, #tpu.memory_space<vmem>>, vector<1x1xf32>
    tpu.vector_store %arg15[%c0_2, %c0_3], %2 {strides = array<i32>} : memref<66x1xf32, #tpu.memory_space<vmem>>, vector<1x1xf32>,
    %c65 = arith.constant 65 : index
    %c0_4 = arith.constant 0 : index
    %4 = vector.load %arg15[%c65, %c0_4] : memref<66x1xf32, #tpu.memory_space<vmem>>, vector<1x1xf32>
    tpu.vector_store %arg15[%c65, %c0_4], %2 {strides = array<i32>} : memref<66x1xf32, #tpu.memory_space<vmem>>, vector<1x1xf32>,
    %c1 = arith.constant 1 : index
    %c0_5 = arith.constant 0 : index
    %5 = vector.load %arg15[%c1, %c0_5] : memref<66x1xf32, #tpu.memory_space<vmem>>, vector<64x1xf32>
    tpu.vector_store %arg15[%c1, %c0_5], %1 {strides = array<i32>} : memref<66x1xf32, #tpu.memory_space<vmem>>, vector<64x1xf32>,
    %cst_6 = arith.constant 0.000000e+00 : f32
    %6 = vector.broadcast %cst_6 : f32 to vector<64x32xf32>
    %c0_7 = arith.constant 0 : index
    %c0_8 = arith.constant 0 : index
    %7 = vector.load %arg15[%c0_7, %c0_8] : memref<66x1xf32, #tpu.memory_space<vmem>>, vector<64x1xf32>
    %c0_9 = arith.constant 0 : index
    %c0_10 = arith.constant 0 : index
    %c0_11 = arith.constant 0 : index
    %8 = vector.load %arg2[%c0_9, %c0_10, %c0_11] : memref<3x1x32xf32, #tpu.memory_space<vmem>>, vector<1x1x32xf32>
    %9 = vector.shape_cast %8 : vector<1x1x32xf32> to vector<1x32xf32>
    %10 = vector.broadcast %7 : vector<64x1xf32> to vector<64x32xf32>
    %11 = vector.broadcast %9 : vector<1x32xf32> to vector<64x32xf32>
    %12 = arith.mulf %10, %11 : vector<64x32xf32>
    %13 = arith.addf %6, %12 : vector<64x32xf32>
    %c1_12 = arith.constant 1 : index
    %c0_13 = arith.constant 0 : index
    %14 = vector.load %arg15[%c1_12, %c0_13] : memref<66x1xf32, #tpu.memory_space<vmem>>, vector<64x1xf32>
    %c1_14 = arith.constant 1 : index
    %c0_15 = arith.constant 0 : index
    %c0_16 = arith.constant 0 : index
    %15 = vector.load %arg2[%c1_14, %c0_15, %c0_16] : memref<3x1x32xf32, #tpu.memory_space<vmem>>, vector<1x1x32xf32>
    %16 = vector.shape_cast %15 : vector<1x1x32xf32> to vector<1x32xf32>
    %17 = vector.broadcast %14 : vector<64x1xf32> to vector<64x32xf32>
    %18 = vector.broadcast %16 : vector<1x32xf32> to vector<64x32xf32>
    %19 = arith.mulf %17, %18 : vector<64x32xf32>
    %20 = arith.addf %13, %19 : vector<64x32xf32>
    %c2 = arith.constant 2 : index
    %c0_17 = arith.constant 0 : index
    %21 = vector.load %arg15[%c2, %c0_17] : memref<66x1xf32, #tpu.memory_space<vmem>>, vector<64x1xf32>
    %c2_18 = arith.constant 2 : index
    %c0_19 = arith.constant 0 : index
    %c0_20 = arith.constant 0 : index
    %22 = vector.load %arg2[%c2_18, %c0_19, %c0_20] : memref<3x1x32xf32, #tpu.memory_space<vmem>>, vector<1x1x32xf32>
    %23 = vector.shape_cast %22 : vector<1x1x32xf32> to vector<1x32xf32>
    %24 = vector.broadcast %21 : vector<64x1xf32> to vector<64x32xf32>
    %25 = vector.broadcast %23 : vector<1x32xf32> to vector<64x32xf32>
    %26 = arith.mulf %24, %25 : vector<64x32xf32>
    %27 = arith.addf %20, %26 : vector<64x32xf32>
    %c0_21 = arith.constant 0 : index
    %c0_22 = arith.constant 0 : index
    %28 = vector.load %arg3[%c0_21, %c0_22] : memref<1x32xf32, #tpu.memory_space<vmem>>, vector<1x32xf32>
    %29 = vector.broadcast %28 : vector<1x32xf32> to vector<64x32xf32>
    %30 = arith.addf %27, %29 : vector<64x32xf32>
    %cst_23 = arith.constant 0.000000e+00 : f32
    %31 = vector.broadcast %cst_23 : f32 to vector<64x32xf32>
    %32 = arith.maximumf %30, %31 : vector<64x32xf32>
    %cst_24 = arith.constant 0.000000e+00 : f32
    %33 = vector.broadcast %cst_24 : f32 to vector<1x32xf32>
    %c0_25 = arith.constant 0 : index
    %c0_26 = arith.constant 0 : index
    %34 = vector.load %arg16[%c0_25, %c0_26] : memref<66x32xf32, #tpu.memory_space<vmem>>, vector<1x32xf32>
    tpu.vector_store %arg16[%c0_25, %c0_26], %33 {strides = array<i32>} : memref<66x32xf32, #tpu.memory_space<vmem>>, vector<1x32xf32>,
    %c65_27 = arith.constant 65 : index
    %c0_28 = arith.constant 0 : index
    %35 = vector.load %arg16[%c65_27, %c0_28] : memref<66x32xf32, #tpu.memory_space<vmem>>, vector<1x32xf32>
    tpu.vector_store %arg16[%c65_27, %c0_28], %33 {strides = array<i32>} : memref<66x32xf32, #tpu.memory_space<vmem>>, vector<1x32xf32>,
    %c1_29 = arith.constant 1 : index
    %c0_30 = arith.constant 0 : index
    %36 = vector.load %arg16[%c1_29, %c0_30] : memref<66x32xf32, #tpu.memory_space<vmem>>, vector<64x32xf32>
    tpu.vector_store %arg16[%c1_29, %c0_30], %32 {strides = array<i32>} : memref<66x32xf32, #tpu.memory_space<vmem>>, vector<64x32xf32>,
    %cst_31 = arith.constant 0.000000e+00 : f32
    %37 = vector.broadcast %cst_31 : f32 to vector<32x32xf32>
    %cst_32 = arith.constant 0.000000e+00 : f32
    %38 = vector.broadcast %cst_32 : f32 to vector<32x32xf32>
    %c0_33 = arith.constant 0 : index
    %c0_34 = arith.constant 0 : index
    %39 = tpu.strided_load %arg16[%c0_33, %c0_34] {strides = array<i32: 2, 1>} : memref<66x32xf32, #tpu.memory_space<vmem>>, vector<32x32xf32>
    %c0_35 = arith.constant 0 : index
    %c0_36 = arith.constant 0 : index
    %c0_37 = arith.constant 0 : index
    %40 = vector.load %arg4[%c0_35, %c0_36, %c0_37] : memref<3x32x32xf32, #tpu.memory_space<vmem>>, vector<1x32x32xf32>
    %41 = vector.shape_cast %40 : vector<1x32x32xf32> to vector<32x32xf32>
    %cst_38 = arith.constant dense<0.000000e+00> : vector<32x32xf32>
    %42 = tpu.matmul %39, %41, %cst_38 {dimension_numbers = #tpu.dot_dimension_numbers<[1], [0], [0], [1], [0, 0, 1, 1], [], []>} : vector<32x32xf32>, vector<32x32xf32>, vector<32x32xf32> -> vector<32x32xf32>
    %43 = arith.addf %37, %42 : vector<32x32xf32>
    %c1_39 = arith.constant 1 : index
    %c0_40 = arith.constant 0 : index
    %44 = tpu.strided_load %arg16[%c1_39, %c0_40] {strides = array<i32: 2, 1>} : memref<66x32xf32, #tpu.memory_space<vmem>>, vector<32x32xf32>
    %c0_41 = arith.constant 0 : index
    %c0_42 = arith.constant 0 : index
    %c0_43 = arith.constant 0 : index
    %45 = vector.load %arg4[%c0_41, %c0_42, %c0_43] : memref<3x32x32xf32, #tpu.memory_space<vmem>>, vector<1x32x32xf32>
    %46 = vector.shape_cast %45 : vector<1x32x32xf32> to vector<32x32xf32>
    %cst_44 = arith.constant dense<0.000000e+00> : vector<32x32xf32>
    %47 = tpu.matmul %44, %46, %cst_44 {dimension_numbers = #tpu.dot_dimension_numbers<[1], [0], [0], [1], [0, 0, 1, 1], [], []>} : vector<32x32xf32>, vector<32x32xf32>, vector<32x32xf32> -> vector<32x32xf32>
    %48 = arith.addf %38, %47 : vector<32x32xf32>
    %c1_45 = arith.constant 1 : index
    %c0_46 = arith.constant 0 : index
    %49 = tpu.strided_load %arg16[%c1_45, %c0_46] {strides = array<i32: 2, 1>} : memref<66x32xf32, #tpu.memory_space<vmem>>, vector<32x32xf32>
    %c1_47 = arith.constant 1 : index
    %c0_48 = arith.constant 0 : index
    %c0_49 = arith.constant 0 : index
    %50 = vector.load %arg4[%c1_47, %c0_48, %c0_49] : memref<3x32x32xf32, #tpu.memory_space<vmem>>, vector<1x32x32xf32>
    %51 = vector.shape_cast %50 : vector<1x32x32xf32> to vector<32x32xf32>
    %cst_50 = arith.constant dense<0.000000e+00> : vector<32x32xf32>
    %52 = tpu.matmul %49, %51, %cst_50 {dimension_numbers = #tpu.dot_dimension_numbers<[1], [0], [0], [1], [0, 0, 1, 1], [], []>} : vector<32x32xf32>, vector<32x32xf32>, vector<32x32xf32> -> vector<32x32xf32>
    %53 = arith.addf %43, %52 : vector<32x32xf32>
    %c2_51 = arith.constant 2 : index
    %c0_52 = arith.constant 0 : index
    %54 = tpu.strided_load %arg16[%c2_51, %c0_52] {strides = array<i32: 2, 1>} : memref<66x32xf32, #tpu.memory_space<vmem>>, vector<32x32xf32>
    %c1_53 = arith.constant 1 : index
    %c0_54 = arith.constant 0 : index
    %c0_55 = arith.constant 0 : index
    %55 = vector.load %arg4[%c1_53, %c0_54, %c0_55] : memref<3x32x32xf32, #tpu.memory_space<vmem>>, vector<1x32x32xf32>
    %56 = vector.shape_cast %55 : vector<1x32x32xf32> to vector<32x32xf32>
    %cst_56 = arith.constant dense<0.000000e+00> : vector<32x32xf32>
    %57 = tpu.matmul %54, %56, %cst_56 {dimension_numbers = #tpu.dot_dimension_numbers<[1], [0], [0], [1], [0, 0, 1, 1], [], []>} : vector<32x32xf32>, vector<32x32xf32>, vector<32x32xf32> -> vector<32x32xf32>
    %58 = arith.addf %48, %57 : vector<32x32xf32>
    %c2_57 = arith.constant 2 : index
    %c0_58 = arith.constant 0 : index
    %59 = tpu.strided_load %arg16[%c2_57, %c0_58] {strides = array<i32: 2, 1>} : memref<66x32xf32, #tpu.memory_space<vmem>>, vector<32x32xf32>
    %c2_59 = arith.constant 2 : index
    %c0_60 = arith.constant 0 : index
    %c0_61 = arith.constant 0 : index
    %60 = vector.load %arg4[%c2_59, %c0_60, %c0_61] : memref<3x32x32xf32, #tpu.memory_space<vmem>>, vector<1x32x32xf32>
    %61 = vector.shape_cast %60 : vector<1x32x32xf32> to vector<32x32xf32>
    %cst_62 = arith.constant dense<0.000000e+00> : vector<32x32xf32>
    %62 = tpu.matmul %59, %61, %cst_62 {dimension_numbers = #tpu.dot_dimension_numbers<[1], [0], [0], [1], [0, 0, 1, 1], [], []>} : vector<32x32xf32>, vector<32x32xf32>, vector<32x32xf32> -> vector<32x32xf32>
    %63 = arith.addf %53, %62 : vector<32x32xf32>
    %c3 = arith.constant 3 : index
    %c0_63 = arith.constant 0 : index
    %64 = tpu.strided_load %arg16[%c3, %c0_63] {strides = array<i32: 2, 1>} : memref<66x32xf32, #tpu.memory_space<vmem>>, vector<32x32xf32>
    %c2_64 = arith.constant 2 : index
    %c0_65 = arith.constant 0 : index
    %c0_66 = arith.constant 0 : index
    %65 = vector.load %arg4[%c2_64, %c0_65, %c0_66] : memref<3x32x32xf32, #tpu.memory_space<vmem>>, vector<1x32x32xf32>
    %66 = vector.shape_cast %65 : vector<1x32x32xf32> to vector<32x32xf32>
    %cst_67 = arith.constant dense<0.000000e+00> : vector<32x32xf32>
    %67 = tpu.matmul %64, %66, %cst_67 {dimension_numbers = #tpu.dot_dimension_numbers<[1], [0], [0], [1], [0, 0, 1, 1], [], []>} : vector<32x32xf32>, vector<32x32xf32>, vector<32x32xf32> -> vector<32x32xf32>
    %68 = arith.addf %58, %67 : vector<32x32xf32>
    %69 = arith.maximumf %63, %68 : vector<32x32xf32>
    %c0_68 = arith.constant 0 : index
    %c0_69 = arith.constant 0 : index
    %70 = vector.load %arg5[%c0_68, %c0_69] : memref<1x32xf32, #tpu.memory_space<vmem>>, vector<1x32xf32>
    %71 = vector.broadcast %70 : vector<1x32xf32> to vector<32x32xf32>
    %72 = arith.addf %69, %71 : vector<32x32xf32>
    %cst_70 = arith.constant 0.000000e+00 : f32
    %73 = vector.broadcast %cst_70 : f32 to vector<32x32xf32>
    %74 = arith.maximumf %72, %73 : vector<32x32xf32>
    %cst_71 = arith.constant 0.000000e+00 : f32
    %75 = vector.broadcast %cst_71 : f32 to vector<1x32xf32>
    %c0_72 = arith.constant 0 : index
    %c0_73 = arith.constant 0 : index
    %76 = vector.load %arg17[%c0_72, %c0_73] : memref<34x32xf32, #tpu.memory_space<vmem>>, vector<1x32xf32>
    tpu.vector_store %arg17[%c0_72, %c0_73], %75 {strides = array<i32>} : memref<34x32xf32, #tpu.memory_space<vmem>>, vector<1x32xf32>,
    %c33 = arith.constant 33 : index
    %c0_74 = arith.constant 0 : index
    %77 = vector.load %arg17[%c33, %c0_74] : memref<34x32xf32, #tpu.memory_space<vmem>>, vector<1x32xf32>
    tpu.vector_store %arg17[%c33, %c0_74], %75 {strides = array<i32>} : memref<34x32xf32, #tpu.memory_space<vmem>>, vector<1x32xf32>,
    %c1_75 = arith.constant 1 : index
    %c0_76 = arith.constant 0 : index
    %78 = vector.load %arg17[%c1_75, %c0_76] : memref<34x32xf32, #tpu.memory_space<vmem>>, vector<32x32xf32>
    tpu.vector_store %arg17[%c1_75, %c0_76], %74 {strides = array<i32>} : memref<34x32xf32, #tpu.memory_space<vmem>>, vector<32x32xf32>,
    %cst_77 = arith.constant 0.000000e+00 : f32
    %79 = vector.broadcast %cst_77 : f32 to vector<32x64xf32>
    %c0_78 = arith.constant 0 : index
    %c0_79 = arith.constant 0 : index
    %80 = vector.load %arg17[%c0_78, %c0_79] : memref<34x32xf32, #tpu.memory_space<vmem>>, vector<32x32xf32>
    %c0_80 = arith.constant 0 : index
    %c0_81 = arith.constant 0 : index
    %c0_82 = arith.constant 0 : index
    %81 = vector.load %arg6[%c0_80, %c0_81, %c0_82] : memref<3x32x64xf32, #tpu.memory_space<vmem>>, vector<1x32x64xf32>
    %82 = vector.shape_cast %81 : vector<1x32x64xf32> to vector<32x64xf32>
    %cst_83 = arith.constant dense<0.000000e+00> : vector<32x64xf32>
    %83 = tpu.matmul %80, %82, %cst_83 {dimension_numbers = #tpu.dot_dimension_numbers<[1], [0], [0], [1], [0, 0, 1, 1], [], []>} : vector<32x32xf32>, vector<32x64xf32>, vector<32x64xf32> -> vector<32x64xf32>
    %84 = arith.addf %79, %83 : vector<32x64xf32>
    %c1_84 = arith.constant 1 : index
    %c0_85 = arith.constant 0 : index
    %85 = vector.load %arg17[%c1_84, %c0_85] : memref<34x32xf32, #tpu.memory_space<vmem>>, vector<32x32xf32>
    %c1_86 = arith.constant 1 : index
    %c0_87 = arith.constant 0 : index
    %c0_88 = arith.constant 0 : index
    %86 = vector.load %arg6[%c1_86, %c0_87, %c0_88] : memref<3x32x64xf32, #tpu.memory_space<vmem>>, vector<1x32x64xf32>
    %87 = vector.shape_cast %86 : vector<1x32x64xf32> to vector<32x64xf32>
    %cst_89 = arith.constant dense<0.000000e+00> : vector<32x64xf32>
    %88 = tpu.matmul %85, %87, %cst_89 {dimension_numbers = #tpu.dot_dimension_numbers<[1], [0], [0], [1], [0, 0, 1, 1], [], []>} : vector<32x32xf32>, vector<32x64xf32>, vector<32x64xf32> -> vector<32x64xf32>
    %89 = arith.addf %84, %88 : vector<32x64xf32>
    %c2_90 = arith.constant 2 : index
    %c0_91 = arith.constant 0 : index
    %90 = vector.load %arg17[%c2_90, %c0_91] : memref<34x32xf32, #tpu.memory_space<vmem>>, vector<32x32xf32>
    %c2_92 = arith.constant 2 : index
    %c0_93 = arith.constant 0 : index
    %c0_94 = arith.constant 0 : index
    %91 = vector.load %arg6[%c2_92, %c0_93, %c0_94] : memref<3x32x64xf32, #tpu.memory_space<vmem>>, vector<1x32x64xf32>
    %92 = vector.shape_cast %91 : vector<1x32x64xf32> to vector<32x64xf32>
    %cst_95 = arith.constant dense<0.000000e+00> : vector<32x64xf32>
    %93 = tpu.matmul %90, %92, %cst_95 {dimension_numbers = #tpu.dot_dimension_numbers<[1], [0], [0], [1], [0, 0, 1, 1], [], []>} : vector<32x32xf32>, vector<32x64xf32>, vector<32x64xf32> -> vector<32x64xf32>
    %94 = arith.addf %89, %93 : vector<32x64xf32>
    %c0_96 = arith.constant 0 : index
    %c0_97 = arith.constant 0 : index
    %95 = vector.load %arg7[%c0_96, %c0_97] : memref<1x64xf32, #tpu.memory_space<vmem>>, vector<1x64xf32>
    %96 = vector.broadcast %95 : vector<1x64xf32> to vector<32x64xf32>
    %97 = arith.addf %94, %96 : vector<32x64xf32>
    %cst_98 = arith.constant 0.000000e+00 : f32
    %98 = vector.broadcast %cst_98 : f32 to vector<32x64xf32>
    %99 = arith.maximumf %97, %98 : vector<32x64xf32>
    %cst_99 = arith.constant 0.000000e+00 : f32
    %100 = vector.broadcast %cst_99 : f32 to vector<1x64xf32>
    %c0_100 = arith.constant 0 : index
    %c0_101 = arith.constant 0 : index
    %101 = vector.load %arg18[%c0_100, %c0_101] : memref<34x64xf32, #tpu.memory_space<vmem>>, vector<1x64xf32>
    tpu.vector_store %arg18[%c0_100, %c0_101], %100 {strides = array<i32>} : memref<34x64xf32, #tpu.memory_space<vmem>>, vector<1x64xf32>,
    %c33_102 = arith.constant 33 : index
    %c0_103 = arith.constant 0 : index
    %102 = vector.load %arg18[%c33_102, %c0_103] : memref<34x64xf32, #tpu.memory_space<vmem>>, vector<1x64xf32>
    tpu.vector_store %arg18[%c33_102, %c0_103], %100 {strides = array<i32>} : memref<34x64xf32, #tpu.memory_space<vmem>>, vector<1x64xf32>,
    %c1_104 = arith.constant 1 : index
    %c0_105 = arith.constant 0 : index
    %103 = vector.load %arg18[%c1_104, %c0_105] : memref<34x64xf32, #tpu.memory_space<vmem>>, vector<32x64xf32>
    tpu.vector_store %arg18[%c1_104, %c0_105], %99 {strides = array<i32>} : memref<34x64xf32, #tpu.memory_space<vmem>>, vector<32x64xf32>,
    %cst_106 = arith.constant 0.000000e+00 : f32
    %104 = vector.broadcast %cst_106 : f32 to vector<16x64xf32>
    %cst_107 = arith.constant 0.000000e+00 : f32
    %105 = vector.broadcast %cst_107 : f32 to vector<16x64xf32>
    %c0_108 = arith.constant 0 : index
    %c0_109 = arith.constant 0 : index
    %106 = tpu.strided_load %arg18[%c0_108, %c0_109] {strides = array<i32: 2, 1>} : memref<34x64xf32, #tpu.memory_space<vmem>>, vector<16x64xf32>
    %c0_110 = arith.constant 0 : index
    %c0_111 = arith.constant 0 : index
    %c0_112 = arith.constant 0 : index
    %107 = vector.load %arg8[%c0_110, %c0_111, %c0_112] : memref<3x64x64xf32, #tpu.memory_space<vmem>>, vector<1x64x64xf32>
    %108 = vector.shape_cast %107 : vector<1x64x64xf32> to vector<64x64xf32>
    %cst_113 = arith.constant dense<0.000000e+00> : vector<16x64xf32>
    %109 = tpu.matmul %106, %108, %cst_113 {dimension_numbers = #tpu.dot_dimension_numbers<[1], [0], [0], [1], [0, 0, 1, 1], [], []>} : vector<16x64xf32>, vector<64x64xf32>, vector<16x64xf32> -> vector<16x64xf32>
    %110 = arith.addf %104, %109 : vector<16x64xf32>
    %c1_114 = arith.constant 1 : index
    %c0_115 = arith.constant 0 : index
    %111 = tpu.strided_load %arg18[%c1_114, %c0_115] {strides = array<i32: 2, 1>} : memref<34x64xf32, #tpu.memory_space<vmem>>, vector<16x64xf32>
    %c0_116 = arith.constant 0 : index
    %c0_117 = arith.constant 0 : index
    %c0_118 = arith.constant 0 : index
    %112 = vector.load %arg8[%c0_116, %c0_117, %c0_118] : memref<3x64x64xf32, #tpu.memory_space<vmem>>, vector<1x64x64xf32>
    %113 = vector.shape_cast %112 : vector<1x64x64xf32> to vector<64x64xf32>
    %cst_119 = arith.constant dense<0.000000e+00> : vector<16x64xf32>
    %114 = tpu.matmul %111, %113, %cst_119 {dimension_numbers = #tpu.dot_dimension_numbers<[1], [0], [0], [1], [0, 0, 1, 1], [], []>} : vector<16x64xf32>, vector<64x64xf32>, vector<16x64xf32> -> vector<16x64xf32>
    %115 = arith.addf %105, %114 : vector<16x64xf32>
    %c1_120 = arith.constant 1 : index
    %c0_121 = arith.constant 0 : index
    %116 = tpu.strided_load %arg18[%c1_120, %c0_121] {strides = array<i32: 2, 1>} : memref<34x64xf32, #tpu.memory_space<vmem>>, vector<16x64xf32>
    %c1_122 = arith.constant 1 : index
    %c0_123 = arith.constant 0 : index
    %c0_124 = arith.constant 0 : index
    %117 = vector.load %arg8[%c1_122, %c0_123, %c0_124] : memref<3x64x64xf32, #tpu.memory_space<vmem>>, vector<1x64x64xf32>
    %118 = vector.shape_cast %117 : vector<1x64x64xf32> to vector<64x64xf32>
    %cst_125 = arith.constant dense<0.000000e+00> : vector<16x64xf32>
    %119 = tpu.matmul %116, %118, %cst_125 {dimension_numbers = #tpu.dot_dimension_numbers<[1], [0], [0], [1], [0, 0, 1, 1], [], []>} : vector<16x64xf32>, vector<64x64xf32>, vector<16x64xf32> -> vector<16x64xf32>
    %120 = arith.addf %110, %119 : vector<16x64xf32>
    %c2_126 = arith.constant 2 : index
    %c0_127 = arith.constant 0 : index
    %121 = tpu.strided_load %arg18[%c2_126, %c0_127] {strides = array<i32: 2, 1>} : memref<34x64xf32, #tpu.memory_space<vmem>>, vector<16x64xf32>
    %c1_128 = arith.constant 1 : index
    %c0_129 = arith.constant 0 : index
    %c0_130 = arith.constant 0 : index
    %122 = vector.load %arg8[%c1_128, %c0_129, %c0_130] : memref<3x64x64xf32, #tpu.memory_space<vmem>>, vector<1x64x64xf32>
    %123 = vector.shape_cast %122 : vector<1x64x64xf32> to vector<64x64xf32>
    %cst_131 = arith.constant dense<0.000000e+00> : vector<16x64xf32>
    %124 = tpu.matmul %121, %123, %cst_131 {dimension_numbers = #tpu.dot_dimension_numbers<[1], [0], [0], [1], [0, 0, 1, 1], [], []>} : vector<16x64xf32>, vector<64x64xf32>, vector<16x64xf32> -> vector<16x64xf32>
    %125 = arith.addf %115, %124 : vector<16x64xf32>
    %c2_132 = arith.constant 2 : index
    %c0_133 = arith.constant 0 : index
    %126 = tpu.strided_load %arg18[%c2_132, %c0_133] {strides = array<i32: 2, 1>} : memref<34x64xf32, #tpu.memory_space<vmem>>, vector<16x64xf32>
    %c2_134 = arith.constant 2 : index
    %c0_135 = arith.constant 0 : index
    %c0_136 = arith.constant 0 : index
    %127 = vector.load %arg8[%c2_134, %c0_135, %c0_136] : memref<3x64x64xf32, #tpu.memory_space<vmem>>, vector<1x64x64xf32>
    %128 = vector.shape_cast %127 : vector<1x64x64xf32> to vector<64x64xf32>
    %cst_137 = arith.constant dense<0.000000e+00> : vector<16x64xf32>
    %129 = tpu.matmul %126, %128, %cst_137 {dimension_numbers = #tpu.dot_dimension_numbers<[1], [0], [0], [1], [0, 0, 1, 1], [], []>} : vector<16x64xf32>, vector<64x64xf32>, vector<16x64xf32> -> vector<16x64xf32>
    %130 = arith.addf %120, %129 : vector<16x64xf32>
    %c3_138 = arith.constant 3 : index
    %c0_139 = arith.constant 0 : index
    %131 = tpu.strided_load %arg18[%c3_138, %c0_139] {strides = array<i32: 2, 1>} : memref<34x64xf32, #tpu.memory_space<vmem>>, vector<16x64xf32>
    %c2_140 = arith.constant 2 : index
    %c0_141 = arith.constant 0 : index
    %c0_142 = arith.constant 0 : index
    %132 = vector.load %arg8[%c2_140, %c0_141, %c0_142] : memref<3x64x64xf32, #tpu.memory_space<vmem>>, vector<1x64x64xf32>
    %133 = vector.shape_cast %132 : vector<1x64x64xf32> to vector<64x64xf32>
    %cst_143 = arith.constant dense<0.000000e+00> : vector<16x64xf32>
    %134 = tpu.matmul %131, %133, %cst_143 {dimension_numbers = #tpu.dot_dimension_numbers<[1], [0], [0], [1], [0, 0, 1, 1], [], []>} : vector<16x64xf32>, vector<64x64xf32>, vector<16x64xf32> -> vector<16x64xf32>
    %135 = arith.addf %125, %134 : vector<16x64xf32>
    %136 = arith.maximumf %130, %135 : vector<16x64xf32>
    %c0_144 = arith.constant 0 : index
    %c0_145 = arith.constant 0 : index
    %137 = vector.load %arg9[%c0_144, %c0_145] : memref<1x64xf32, #tpu.memory_space<vmem>>, vector<1x64xf32>
    %138 = vector.broadcast %137 : vector<1x64xf32> to vector<16x64xf32>
    %139 = arith.addf %136, %138 : vector<16x64xf32>
    %cst_146 = arith.constant 0.000000e+00 : f32
    %140 = vector.broadcast %cst_146 : f32 to vector<16x64xf32>
    %141 = arith.maximumf %139, %140 : vector<16x64xf32>
    %cst_147 = arith.constant 0.000000e+00 : f32
    %142 = vector.broadcast %cst_147 : f32 to vector<1x64xf32>
    %c0_148 = arith.constant 0 : index
    %c0_149 = arith.constant 0 : index
    %143 = vector.load %arg19[%c0_148, %c0_149] : memref<18x64xf32, #tpu.memory_space<vmem>>, vector<1x64xf32>
    tpu.vector_store %arg19[%c0_148, %c0_149], %142 {strides = array<i32>} : memref<18x64xf32, #tpu.memory_space<vmem>>, vector<1x64xf32>,
    %c17 = arith.constant 17 : index
    %c0_150 = arith.constant 0 : index
    %144 = vector.load %arg19[%c17, %c0_150] : memref<18x64xf32, #tpu.memory_space<vmem>>, vector<1x64xf32>
    tpu.vector_store %arg19[%c17, %c0_150], %142 {strides = array<i32>} : memref<18x64xf32, #tpu.memory_space<vmem>>, vector<1x64xf32>,
    %c1_151 = arith.constant 1 : index
    %c0_152 = arith.constant 0 : index
    %145 = vector.load %arg19[%c1_151, %c0_152] : memref<18x64xf32, #tpu.memory_space<vmem>>, vector<16x64xf32>
    tpu.vector_store %arg19[%c1_151, %c0_152], %141 {strides = array<i32>} : memref<18x64xf32, #tpu.memory_space<vmem>>, vector<16x64xf32>,
    %cst_153 = arith.constant 0.000000e+00 : f32
    %146 = vector.broadcast %cst_153 : f32 to vector<8x128xf32>
    %cst_154 = arith.constant 0.000000e+00 : f32
    %147 = vector.broadcast %cst_154 : f32 to vector<8x128xf32>
    %c0_155 = arith.constant 0 : index
    %c0_156 = arith.constant 0 : index
    %148 = tpu.strided_load %arg19[%c0_155, %c0_156] {strides = array<i32: 2, 1>} : memref<18x64xf32, #tpu.memory_space<vmem>>, vector<8x64xf32>
    %c0_157 = arith.constant 0 : index
    %c0_158 = arith.constant 0 : index
    %c0_159 = arith.constant 0 : index
    %149 = vector.load %arg10[%c0_157, %c0_158, %c0_159] : memref<3x64x128xf32, #tpu.memory_space<vmem>>, vector<1x64x128xf32>
    %150 = vector.shape_cast %149 : vector<1x64x128xf32> to vector<64x128xf32>
    %cst_160 = arith.constant dense<0.000000e+00> : vector<8x128xf32>
    %151 = tpu.matmul %148, %150, %cst_160 {dimension_numbers = #tpu.dot_dimension_numbers<[1], [0], [0], [1], [0, 0, 1, 1], [], []>} : vector<8x64xf32>, vector<64x128xf32>, vector<8x128xf32> -> vector<8x128xf32>
    %152 = arith.addf %146, %151 : vector<8x128xf32>
    %c1_161 = arith.constant 1 : index
    %c0_162 = arith.constant 0 : index
    %153 = tpu.strided_load %arg19[%c1_161, %c0_162] {strides = array<i32: 2, 1>} : memref<18x64xf32, #tpu.memory_space<vmem>>, vector<8x64xf32>
    %c0_163 = arith.constant 0 : index
    %c0_164 = arith.constant 0 : index
    %c0_165 = arith.constant 0 : index
    %154 = vector.load %arg10[%c0_163, %c0_164, %c0_165] : memref<3x64x128xf32, #tpu.memory_space<vmem>>, vector<1x64x128xf32>
    %155 = vector.shape_cast %154 : vector<1x64x128xf32> to vector<64x128xf32>
    %cst_166 = arith.constant dense<0.000000e+00> : vector<8x128xf32>
    %156 = tpu.matmul %153, %155, %cst_166 {dimension_numbers = #tpu.dot_dimension_numbers<[1], [0], [0], [1], [0, 0, 1, 1], [], []>} : vector<8x64xf32>, vector<64x128xf32>, vector<8x128xf32> -> vector<8x128xf32>
    %157 = arith.addf %147, %156 : vector<8x128xf32>
    %c1_167 = arith.constant 1 : index
    %c0_168 = arith.constant 0 : index
    %158 = tpu.strided_load %arg19[%c1_167, %c0_168] {strides = array<i32: 2, 1>} : memref<18x64xf32, #tpu.memory_space<vmem>>, vector<8x64xf32>
    %c1_169 = arith.constant 1 : index
    %c0_170 = arith.constant 0 : index
    %c0_171 = arith.constant 0 : index
    %159 = vector.load %arg10[%c1_169, %c0_170, %c0_171] : memref<3x64x128xf32, #tpu.memory_space<vmem>>, vector<1x64x128xf32>
    %160 = vector.shape_cast %159 : vector<1x64x128xf32> to vector<64x128xf32>
    %cst_172 = arith.constant dense<0.000000e+00> : vector<8x128xf32>
    %161 = tpu.matmul %158, %160, %cst_172 {dimension_numbers = #tpu.dot_dimension_numbers<[1], [0], [0], [1], [0, 0, 1, 1], [], []>} : vector<8x64xf32>, vector<64x128xf32>, vector<8x128xf32> -> vector<8x128xf32>
    %162 = arith.addf %152, %161 : vector<8x128xf32>
    %c2_173 = arith.constant 2 : index
    %c0_174 = arith.constant 0 : index
    %163 = tpu.strided_load %arg19[%c2_173, %c0_174] {strides = array<i32: 2, 1>} : memref<18x64xf32, #tpu.memory_space<vmem>>, vector<8x64xf32>
    %c1_175 = arith.constant 1 : index
    %c0_176 = arith.constant 0 : index
    %c0_177 = arith.constant 0 : index
    %164 = vector.load %arg10[%c1_175, %c0_176, %c0_177] : memref<3x64x128xf32, #tpu.memory_space<vmem>>, vector<1x64x128xf32>
    %165 = vector.shape_cast %164 : vector<1x64x128xf32> to vector<64x128xf32>
    %cst_178 = arith.constant dense<0.000000e+00> : vector<8x128xf32>
    %166 = tpu.matmul %163, %165, %cst_178 {dimension_numbers = #tpu.dot_dimension_numbers<[1], [0], [0], [1], [0, 0, 1, 1], [], []>} : vector<8x64xf32>, vector<64x128xf32>, vector<8x128xf32> -> vector<8x128xf32>
    %167 = arith.addf %157, %166 : vector<8x128xf32>
    %c2_179 = arith.constant 2 : index
    %c0_180 = arith.constant 0 : index
    %168 = tpu.strided_load %arg19[%c2_179, %c0_180] {strides = array<i32: 2, 1>} : memref<18x64xf32, #tpu.memory_space<vmem>>, vector<8x64xf32>
    %c2_181 = arith.constant 2 : index
    %c0_182 = arith.constant 0 : index
    %c0_183 = arith.constant 0 : index
    %169 = vector.load %arg10[%c2_181, %c0_182, %c0_183] : memref<3x64x128xf32, #tpu.memory_space<vmem>>, vector<1x64x128xf32>
    %170 = vector.shape_cast %169 : vector<1x64x128xf32> to vector<64x128xf32>
    %cst_184 = arith.constant dense<0.000000e+00> : vector<8x128xf32>
    %171 = tpu.matmul %168, %170, %cst_184 {dimension_numbers = #tpu.dot_dimension_numbers<[1], [0], [0], [1], [0, 0, 1, 1], [], []>} : vector<8x64xf32>, vector<64x128xf32>, vector<8x128xf32> -> vector<8x128xf32>
    %172 = arith.addf %162, %171 : vector<8x128xf32>
    %c3_185 = arith.constant 3 : index
    %c0_186 = arith.constant 0 : index
    %173 = tpu.strided_load %arg19[%c3_185, %c0_186] {strides = array<i32: 2, 1>} : memref<18x64xf32, #tpu.memory_space<vmem>>, vector<8x64xf32>
    %c2_187 = arith.constant 2 : index
    %c0_188 = arith.constant 0 : index
    %c0_189 = arith.constant 0 : index
    %174 = vector.load %arg10[%c2_187, %c0_188, %c0_189] : memref<3x64x128xf32, #tpu.memory_space<vmem>>, vector<1x64x128xf32>
    %175 = vector.shape_cast %174 : vector<1x64x128xf32> to vector<64x128xf32>
    %cst_190 = arith.constant dense<0.000000e+00> : vector<8x128xf32>
    %176 = tpu.matmul %173, %175, %cst_190 {dimension_numbers = #tpu.dot_dimension_numbers<[1], [0], [0], [1], [0, 0, 1, 1], [], []>} : vector<8x64xf32>, vector<64x128xf32>, vector<8x128xf32> -> vector<8x128xf32>
    %177 = arith.addf %167, %176 : vector<8x128xf32>
    %178 = arith.maximumf %172, %177 : vector<8x128xf32>
    %c0_191 = arith.constant 0 : index
    %c0_192 = arith.constant 0 : index
    %179 = vector.load %arg11[%c0_191, %c0_192] : memref<1x128xf32, #tpu.memory_space<vmem>>, vector<1x128xf32>
    %180 = vector.broadcast %179 : vector<1x128xf32> to vector<8x128xf32>
    %181 = arith.addf %178, %180 : vector<8x128xf32>
    %cst_193 = arith.constant 0.000000e+00 : f32
    %182 = vector.broadcast %cst_193 : f32 to vector<8x128xf32>
    %183 = arith.maximumf %181, %182 : vector<8x128xf32>
    %cst_194 = arith.constant 0.000000e+00 : f32
    %184 = vector.broadcast %cst_194 : f32 to vector<1x128xf32>
    %c0_195 = arith.constant 0 : index
    %c0_196 = arith.constant 0 : index
    %185 = vector.load %arg20[%c0_195, %c0_196] : memref<10x128xf32, #tpu.memory_space<vmem>>, vector<1x128xf32>
    tpu.vector_store %arg20[%c0_195, %c0_196], %184 {strides = array<i32>} : memref<10x128xf32, #tpu.memory_space<vmem>>, vector<1x128xf32>,
    %c9 = arith.constant 9 : index
    %c0_197 = arith.constant 0 : index
    %186 = vector.load %arg20[%c9, %c0_197] : memref<10x128xf32, #tpu.memory_space<vmem>>, vector<1x128xf32>
    tpu.vector_store %arg20[%c9, %c0_197], %184 {strides = array<i32>} : memref<10x128xf32, #tpu.memory_space<vmem>>, vector<1x128xf32>,
    %c1_198 = arith.constant 1 : index
    %c0_199 = arith.constant 0 : index
    %187 = vector.load %arg20[%c1_198, %c0_199] : memref<10x128xf32, #tpu.memory_space<vmem>>, vector<8x128xf32>
    tpu.vector_store %arg20[%c1_198, %c0_199], %183 {strides = array<i32>} : memref<10x128xf32, #tpu.memory_space<vmem>>, vector<8x128xf32>,
    %cst_200 = arith.constant 0.000000e+00 : f32
    %188 = vector.broadcast %cst_200 : f32 to vector<4x256xf32>
    %cst_201 = arith.constant 0.000000e+00 : f32
    %189 = vector.broadcast %cst_201 : f32 to vector<4x256xf32>
    %c0_202 = arith.constant 0 : index
    %c0_203 = arith.constant 0 : index
    %190 = tpu.strided_load %arg20[%c0_202, %c0_203] {strides = array<i32: 2, 1>} : memref<10x128xf32, #tpu.memory_space<vmem>>, vector<4x128xf32>
    %c0_204 = arith.constant 0 : index
    %c0_205 = arith.constant 0 : index
    %c0_206 = arith.constant 0 : index
    %191 = vector.load %arg12[%c0_204, %c0_205, %c0_206] : memref<3x128x256xf32, #tpu.memory_space<vmem>>, vector<1x128x256xf32>
    %192 = vector.shape_cast %191 : vector<1x128x256xf32> to vector<128x256xf32>
    %cst_207 = arith.constant dense<0.000000e+00> : vector<4x256xf32>
    %193 = tpu.matmul %190, %192, %cst_207 {dimension_numbers = #tpu.dot_dimension_numbers<[1], [0], [0], [1], [0, 0, 1, 1], [], []>} : vector<4x128xf32>, vector<128x256xf32>, vector<4x256xf32> -> vector<4x256xf32>
    %194 = arith.addf %188, %193 : vector<4x256xf32>
    %c1_208 = arith.constant 1 : index
    %c0_209 = arith.constant 0 : index
    %195 = tpu.strided_load %arg20[%c1_208, %c0_209] {strides = array<i32: 2, 1>} : memref<10x128xf32, #tpu.memory_space<vmem>>, vector<4x128xf32>
    %c0_210 = arith.constant 0 : index
    %c0_211 = arith.constant 0 : index
    %c0_212 = arith.constant 0 : index
    %196 = vector.load %arg12[%c0_210, %c0_211, %c0_212] : memref<3x128x256xf32, #tpu.memory_space<vmem>>, vector<1x128x256xf32>
    %197 = vector.shape_cast %196 : vector<1x128x256xf32> to vector<128x256xf32>
    %cst_213 = arith.constant dense<0.000000e+00> : vector<4x256xf32>
    %198 = tpu.matmul %195, %197, %cst_213 {dimension_numbers = #tpu.dot_dimension_numbers<[1], [0], [0], [1], [0, 0, 1, 1], [], []>} : vector<4x128xf32>, vector<128x256xf32>, vector<4x256xf32> -> vector<4x256xf32>
    %199 = arith.addf %189, %198 : vector<4x256xf32>
    %c1_214 = arith.constant 1 : index
    %c0_215 = arith.constant 0 : index
    %200 = tpu.strided_load %arg20[%c1_214, %c0_215] {strides = array<i32: 2, 1>} : memref<10x128xf32, #tpu.memory_space<vmem>>, vector<4x128xf32>
    %c1_216 = arith.constant 1 : index
    %c0_217 = arith.constant 0 : index
    %c0_218 = arith.constant 0 : index
    %201 = vector.load %arg12[%c1_216, %c0_217, %c0_218] : memref<3x128x256xf32, #tpu.memory_space<vmem>>, vector<1x128x256xf32>
    %202 = vector.shape_cast %201 : vector<1x128x256xf32> to vector<128x256xf32>
    %cst_219 = arith.constant dense<0.000000e+00> : vector<4x256xf32>
    %203 = tpu.matmul %200, %202, %cst_219 {dimension_numbers = #tpu.dot_dimension_numbers<[1], [0], [0], [1], [0, 0, 1, 1], [], []>} : vector<4x128xf32>, vector<128x256xf32>, vector<4x256xf32> -> vector<4x256xf32>
    %204 = arith.addf %194, %203 : vector<4x256xf32>
    %c2_220 = arith.constant 2 : index
    %c0_221 = arith.constant 0 : index
    %205 = tpu.strided_load %arg20[%c2_220, %c0_221] {strides = array<i32: 2, 1>} : memref<10x128xf32, #tpu.memory_space<vmem>>, vector<4x128xf32>
    %c1_222 = arith.constant 1 : index
    %c0_223 = arith.constant 0 : index
    %c0_224 = arith.constant 0 : index
    %206 = vector.load %arg12[%c1_222, %c0_223, %c0_224] : memref<3x128x256xf32, #tpu.memory_space<vmem>>, vector<1x128x256xf32>
    %207 = vector.shape_cast %206 : vector<1x128x256xf32> to vector<128x256xf32>
    %cst_225 = arith.constant dense<0.000000e+00> : vector<4x256xf32>
    %208 = tpu.matmul %205, %207, %cst_225 {dimension_numbers = #tpu.dot_dimension_numbers<[1], [0], [0], [1], [0, 0, 1, 1], [], []>} : vector<4x128xf32>, vector<128x256xf32>, vector<4x256xf32> -> vector<4x256xf32>
    %209 = arith.addf %199, %208 : vector<4x256xf32>
    %c2_226 = arith.constant 2 : index
    %c0_227 = arith.constant 0 : index
    %210 = tpu.strided_load %arg20[%c2_226, %c0_227] {strides = array<i32: 2, 1>} : memref<10x128xf32, #tpu.memory_space<vmem>>, vector<4x128xf32>
    %c2_228 = arith.constant 2 : index
    %c0_229 = arith.constant 0 : index
    %c0_230 = arith.constant 0 : index
    %211 = vector.load %arg12[%c2_228, %c0_229, %c0_230] : memref<3x128x256xf32, #tpu.memory_space<vmem>>, vector<1x128x256xf32>
    %212 = vector.shape_cast %211 : vector<1x128x256xf32> to vector<128x256xf32>
    %cst_231 = arith.constant dense<0.000000e+00> : vector<4x256xf32>
    %213 = tpu.matmul %210, %212, %cst_231 {dimension_numbers = #tpu.dot_dimension_numbers<[1], [0], [0], [1], [0, 0, 1, 1], [], []>} : vector<4x128xf32>, vector<128x256xf32>, vector<4x256xf32> -> vector<4x256xf32>
    %214 = arith.addf %204, %213 : vector<4x256xf32>
    %c3_232 = arith.constant 3 : index
    %c0_233 = arith.constant 0 : index
    %215 = tpu.strided_load %arg20[%c3_232, %c0_233] {strides = array<i32: 2, 1>} : memref<10x128xf32, #tpu.memory_space<vmem>>, vector<4x128xf32>
    %c2_234 = arith.constant 2 : index
    %c0_235 = arith.constant 0 : index
    %c0_236 = arith.constant 0 : index
    %216 = vector.load %arg12[%c2_234, %c0_235, %c0_236] : memref<3x128x256xf32, #tpu.memory_space<vmem>>, vector<1x128x256xf32>
    %217 = vector.shape_cast %216 : vector<1x128x256xf32> to vector<128x256xf32>
    %cst_237 = arith.constant dense<0.000000e+00> : vector<4x256xf32>
    %218 = tpu.matmul %215, %217, %cst_237 {dimension_numbers = #tpu.dot_dimension_numbers<[1], [0], [0], [1], [0, 0, 1, 1], [], []>} : vector<4x128xf32>, vector<128x256xf32>, vector<4x256xf32> -> vector<4x256xf32>
    %219 = arith.addf %209, %218 : vector<4x256xf32>
    %220 = arith.maximumf %214, %219 : vector<4x256xf32>
    %c0_238 = arith.constant 0 : index
    %c0_239 = arith.constant 0 : index
    %221 = vector.load %arg13[%c0_238, %c0_239] : memref<1x256xf32, #tpu.memory_space<vmem>>, vector<1x256xf32>
    %222 = vector.broadcast %221 : vector<1x256xf32> to vector<4x256xf32>
    %223 = arith.addf %220, %222 : vector<4x256xf32>
    %cst_240 = arith.constant 0.000000e+00 : f32
    %224 = vector.broadcast %cst_240 : f32 to vector<4x256xf32>
    %225 = arith.maximumf %223, %224 : vector<4x256xf32>
    %c0_241 = arith.constant 0 : index
    %c0_242 = arith.constant 0 : index
    %c0_243 = arith.constant 0 : index
    %226 = vector.load %arg14[%c0_241, %c0_242, %c0_243] : memref<1x4x256xf32, #tpu.memory_space<vmem>>, vector<1x4x256xf32>
    %227 = vector.shape_cast %226 : vector<1x4x256xf32> to vector<4x256xf32>
    %228 = vector.shape_cast %225 : vector<4x256xf32> to vector<1x4x256xf32>
    tpu.vector_store %arg14[%c0_241, %c0_242, %c0_243], %228 {strides = array<i32>} : memref<1x4x256xf32, #tpu.memory_space<vmem>>, vector<1x4x256xf32>,
    return
  }
  func.func @transform_0(%arg0: i32) -> (i32, i32, i32) {
    %c0_i32 = arith.constant 0 : i32
    %c0_i32_0 = arith.constant 0 : i32
    %c0_i32_1 = arith.constant 0 : i32
    return %arg0, %c0_i32, %c0_i32_0 : i32, i32, i32
  }
  func.func @transform_1(%arg0: i32) -> (i32, i32, i32) {
    %c0_i32 = arith.constant 0 : i32
    %c0_i32_0 = arith.constant 0 : i32
    %c0_i32_1 = arith.constant 0 : i32
    %c0_i32_2 = arith.constant 0 : i32
    return %c0_i32, %c0_i32_0, %c0_i32_1 : i32, i32, i32
  }
  func.func @transform_2(%arg0: i32) -> (i32, i32) {
    %c0_i32 = arith.constant 0 : i32
    %c0_i32_0 = arith.constant 0 : i32
    %c0_i32_1 = arith.constant 0 : i32
    return %c0_i32, %c0_i32_0 : i32, i32
  }
  func.func @transform_3(%arg0: i32) -> (i32, i32, i32) {
    %c0_i32 = arith.constant 0 : i32
    %c0_i32_0 = arith.constant 0 : i32
    %c0_i32_1 = arith.constant 0 : i32
    %c0_i32_2 = arith.constant 0 : i32
    return %c0_i32, %c0_i32_0, %c0_i32_1 : i32, i32, i32
  }
  func.func @transform_4(%arg0: i32) -> (i32, i32) {
    %c0_i32 = arith.constant 0 : i32
    %c0_i32_0 = arith.constant 0 : i32
    %c0_i32_1 = arith.constant 0 : i32
    return %c0_i32, %c0_i32_0 : i32, i32
  }
  func.func @transform_5(%arg0: i32) -> (i32, i32, i32) {
    %c0_i32 = arith.constant 0 : i32
    %c0_i32_0 = arith.constant 0 : i32
    %c0_i32_1 = arith.constant 0 : i32
    %c0_i32_2 = arith.constant 0 : i32
    return %c0_i32, %c0_i32_0, %c0_i32_1 : i32, i32, i32
  }
  func.func @transform_6(%arg0: i32) -> (i32, i32) {
    %c0_i32 = arith.constant 0 : i32
    %c0_i32_0 = arith.constant 0 : i32
    %c0_i32_1 = arith.constant 0 : i32
    return %c0_i32, %c0_i32_0 : i32, i32
  }
  func.func @transform_7(%arg0: i32) -> (i32, i32, i32) {
    %c0_i32 = arith.constant 0 : i32
    %c0_i32_0 = arith.constant 0 : i32
    %c0_i32_1 = arith.constant 0 : i32
    %c0_i32_2 = arith.constant 0 : i32
    return %c0_i32, %c0_i32_0, %c0_i32_1 : i32, i32, i32
  }
  func.func @transform_8(%arg0: i32) -> (i32, i32) {
    %c0_i32 = arith.constant 0 : i32
    %c0_i32_0 = arith.constant 0 : i32
    %c0_i32_1 = arith.constant 0 : i32
    return %c0_i32, %c0_i32_0 : i32, i32
  }
  func.func @transform_9(%arg0: i32) -> (i32, i32, i32) {
    %c0_i32 = arith.constant 0 : i32
    %c0_i32_0 = arith.constant 0 : i32
    %c0_i32_1 = arith.constant 0 : i32
    %c0_i32_2 = arith.constant 0 : i32
    return %c0_i32, %c0_i32_0, %c0_i32_1 : i32, i32, i32
  }
  func.func @transform_10(%arg0: i32) -> (i32, i32) {
    %c0_i32 = arith.constant 0 : i32
    %c0_i32_0 = arith.constant 0 : i32
    %c0_i32_1 = arith.constant 0 : i32
    return %c0_i32, %c0_i32_0 : i32, i32
  }
  func.func @transform_11(%arg0: i32) -> (i32, i32, i32) {
    %c0_i32 = arith.constant 0 : i32
    %c0_i32_0 = arith.constant 0 : i32
    %c0_i32_1 = arith.constant 0 : i32
    %c0_i32_2 = arith.constant 0 : i32
    return %c0_i32, %c0_i32_0, %c0_i32_1 : i32, i32, i32
  }
  func.func @transform_12(%arg0: i32) -> (i32, i32) {
    %c0_i32 = arith.constant 0 : i32
    %c0_i32_0 = arith.constant 0 : i32
    %c0_i32_1 = arith.constant 0 : i32
    return %c0_i32, %c0_i32_0 : i32, i32
  }
  func.func @transform_13(%arg0: i32) -> (i32, i32, i32) {
    %c0_i32 = arith.constant 0 : i32
    %c0_i32_0 = arith.constant 0 : i32
    %c0_i32_1 = arith.constant 0 : i32
    return %arg0, %c0_i32, %c0_i32_0 : i32, i32, i32
  }
}

</mosaic_0001>

<llo_original>
// kernel: _lambda_.1
$region0: #{_lambda_.1}
  #allocation0 [shape = 'u32[]', space=smem, size = 0x4, offset = 0x4, fixed_abs, tag = 'smem constant byte address 0x4 - core index']
  #allocation1 [shape = 'u32[72,128]{1,0:T(1,128)}', space=vmem, size = 0x9000, scoped, tag = 'internal scratch']
  #allocation2 [shape = 'f32[66,1]{1,0:T(8,128)}', space=vmem, size = 0x9000, scoped, tag = 'scratch operand']
  #allocation3 [shape = 'f32[66,32]{1,0:T(8,128)}', space=vmem, size = 0x9000, scoped, tag = 'scratch operand']
  #allocation4 [shape = 'f32[34,32]{1,0:T(8,128)}', space=vmem, size = 0x5000, scoped, tag = 'scratch operand']
  #allocation5 [shape = 'f32[34,64]{1,0:T(8,128)}', space=vmem, size = 0x5000, scoped, tag = 'scratch operand']
  #allocation6 [shape = 'f32[18,64]{1,0:T(8,128)}', space=vmem, size = 0x3000, scoped, tag = 'scratch operand']
  #allocation7 [shape = 'f32[10,128]{1,0:T(8,128)}', space=vmem, size = 0x2000, scoped, tag = 'scratch operand']
  %s0 = inlined_call_operand.vmem [shape: f32[2,64,1], index: 0, kind: input, shape index: {}]
  %s1 = inlined_call_operand.vmem [shape: f32[3,1,32], index: 1, kind: input, shape index: {}]
  %s2 = inlined_call_operand.vmem [shape: f32[1,32], index: 2, kind: input, shape index: {}]
  %s3 = inlined_call_operand.hbm [shape: f32[3,32,32], index: 3, kind: input, shape index: {}]
  %s4 = inlined_call_operand.vmem [shape: f32[1,32], index: 4, kind: input, shape index: {}]
  %s5 = inlined_call_operand.vmem [shape: f32[3,32,64], index: 5, kind: input, shape index: {}]
  %s6 = inlined_call_operand.vmem [shape: f32[1,64], index: 6, kind: input, shape index: {}]
  %s7 = inlined_call_operand.hbm [shape: f32[3,64,64], index: 7, kind: input, shape index: {}]
  %s8 = inlined_call_operand.vmem [shape: f32[1,64], index: 8, kind: input, shape index: {}]
  %s9 = inlined_call_operand.hbm [shape: f32[3,64,128], index: 9, kind: input, shape index: {}]
  %s10 = inlined_call_operand.vmem [shape: f32[1,128], index: 10, kind: input, shape index: {}]
  %s11 = inlined_call_operand.hbm [shape: f32[3,128,256], index: 11, kind: input, shape index: {}]
  %s12 = inlined_call_operand.vmem [shape: f32[1,256], index: 12, kind: input, shape index: {}]
  %s13 = inlined_call_operand.hbm [shape: f32[2,4,256], index: 13, kind: output, shape index: {}]
  %s14 = sld [smem:[#allocation0]]
  $region101: #{_lambda_.1} parent=0
    _
  %s16 = ssub.s32 1, %s14
  %s17 = scalar_select 0, %s16, %s14
  $region1: #{_lambda_.1} parent=0
    #allocation8 [shape = 'u8[49152]{0}', space=vmem, size = 0xc000, scoped, tag = 'input window, operand 3, single buffered']
    #allocation9 [shape = 's32[2]{0}', space=sflag, size = 0x8, scoped, tag = 'scoped memory for _lambda_.1']
    #allocation10 [shape = 's32[2]{0}', space=sflag, size = 0x8, scoped, tag = 'scoped memory for _lambda_.1']
    #allocation11 [shape = 'u8[98304]{0}', space=vmem, size = 0x18000, scoped, tag = 'input window, operand 7, single buffered']
    #allocation12 [shape = 's32[1]{0}', space=sflag, size = 0x4, scoped, tag = 'scoped memory for _lambda_.1']
    #allocation13 [shape = 'u8[98304]{0}', space=vmem, size = 0x18000, scoped, tag = 'input window, operand 9, single buffered']
    #allocation14 [shape = 'u8[393216]{0}', space=vmem, size = 0x60000, scoped, tag = 'input window, operand 11, single buffered']
    #allocation15 [shape = 's32[1]{0}', space=sflag, size = 0x4, scoped, tag = 'scoped memory for _lambda_.1']
    #allocation16 [shape = 'u8[8192]{0}', space=vmem, size = 0x2000, scoped, tag = 'output window, operand 0']
    %18 = vsyncpa [#allocation9], 0
    %19 = vsyncpa [#allocation12], 0
    %20 = vsyncpa [#allocation15], 0
    %21 = vsyncpa [#allocation10], 0
    %s22 = scalar_lea.sflag [#allocation10], 1
    %23 = vsyncpa %s22, 0
    loop: start=0, step=1, limit=4
    $region2: #{_lambda_.1} parent=1 // loop_pre_header
      _
    $region3: #{_lambda_.1} parent=1 // loop_header
      %s25 = sphi 0, %s29
      %p26 = scmp.ge.s32.totalorder %s25, 4
      %s35 = sphi 0, %s37
      %s38 = sphi 0, %s35
      %s39 = sphi 0, %s38
      %s55 = sphi 0, %s39
      %s59 = sphi 0, %s59
      %s61 = sphi 0, %s59
      %s62 = sphi 0, %s61
      %s76 = sphi 0, %s62
      %s80 = sphi 0, %s80
      %s82 = sphi 0, %s80
      %s83 = sphi 0, %s82
      %s97 = sphi 0, %s83
      %s101 = sphi 0, %s101
      %s103 = sphi 0, %s101
      %s104 = sphi 0, %s103
      %s118 = sphi 0, %s104
      %s122 = sphi 0, %s122
      %s124 = sphi 0, %s122
      %s125 = sphi 0, %s124
      %s139 = sphi 0, %s125
      %s143 = sphi 0, %s143
      %s145 = sphi 0, %s143
      %s146 = sphi 0, %s145
      %s160 = sphi 0, %s146
      %s164 = sphi 0, %s164
      %s166 = sphi 0, %s164
      %s167 = sphi 0, %s166
      %s181 = sphi 0, %s167
      %s185 = sphi 0, %s185
      %s187 = sphi 0, %s185
      %s188 = sphi 0, %s187
      %s202 = sphi 0, %s188
      %s206 = sphi 0, %s206
      %s208 = sphi 0, %s206
      %s209 = sphi 0, %s208
      %s223 = sphi 0, %s209
      %s227 = sphi 0, %s227
      %s229 = sphi 0, %s227
      %s230 = sphi 0, %s229
      %s244 = sphi 0, %s230
      %s248 = sphi 0, %s248
      %s250 = sphi 0, %s248
      %s251 = sphi 0, %s250
      %s265 = sphi 0, %s251
      %s269 = sphi 0, %s269
      %s271 = sphi 0, %s269
      %s272 = sphi 0, %s271
      %s286 = sphi 0, %s272
      %s290 = sphi 0, %s290
      %s292 = sphi 0, %s290
      %s293 = sphi 0, %s292
      %s307 = sphi 0, %s293
      %s313 = sphi 0, %s315
      %s316 = sphi 0, %s313
      %s317 = sphi 0, %s316
      %s333 = sphi 0, %s317
    $region4: #{_lambda_.1} parent=1 // loop_header_branch
      %28 = sbr.rel (%p26) target = $region8
    $region5: #{_lambda_.1} parent=1 // loop_body
      %s30 = ssub.s32 %s25, 1
      %s31 = ssub.s32 %s25, 2
      %s32 = sadd.s32 %s25, 1
      %s33 = ssub.s32 %s25, %s32
      %p34 = scmp.eq.s32.totalorder %s33, 0
      %s36 = sadd.s32 %s35, 1
      %s37 = scalar_select %p34, %s35, %s36
      %p40 = pneg %p34
      %p41 = scmp.eq.s32.totalorder %s25, 1
      %p42 = por %p40, %p41
      %p43 = scmp.ne.s32.totalorder %s35, %s38
      %p44 = scmp.eq.s32.totalorder %s25, 0
      %p45 = por %p43, %p44
      %p46 = scmp.ne.s32.totalorder %s35, %s38
      %p47 = scmp.eq.s32.totalorder %s30, 1
      %p48 = por %p46, %p47
      %p49 = scmp.ne.s32.totalorder %s38, %s39
      %p50 = scmp.eq.s32.totalorder %s30, 0
      %p51 = por %p49, %p50
      %p52 = scmp.ne.s32.totalorder %s38, %s39
      %p53 = scmp.eq.s32.totalorder %s31, 1
      %p54 = por %p52, %p53
      %p56 = scmp.ne.s32.totalorder %s39, %s55
      %p57 = scmp.eq.s32.totalorder %s31, 0
      %p58 = por %p56, %p57
      %s60 = sadd.s32 %s59, 1
      %p63 = scmp.eq.s32.totalorder %s25, 1
      %p64 = scmp.ne.s32.totalorder %s59, %s61
      %p65 = scmp.eq.s32.totalorder %s25, 0
      %p66 = por %p64, %p65
      %p67 = scmp.ne.s32.totalorder %s59, %s61
      %p68 = scmp.eq.s32.totalorder %s30, 1
      %p69 = por %p67, %p68
      %p70 = scmp.ne.s32.totalorder %s61, %s62
      %p71 = scmp.eq.s32.totalorder %s30, 0
      %p72 = por %p70, %p71
      %p73 = scmp.ne.s32.totalorder %s61, %s62
      %p74 = scmp.eq.s32.totalorder %s31, 1
      %p75 = por %p73, %p74
      %p77 = scmp.ne.s32.totalorder %s62, %s76
      %p78 = scmp.eq.s32.totalorder %s31, 0
      %p79 = por %p77, %p78
      %s81 = sadd.s32 %s80, 1
      %p84 = scmp.eq.s32.totalorder %s25, 1
      %p85 = scmp.ne.s32.totalorder %s80, %s82
      %p86 = scmp.eq.s32.totalorder %s25, 0
      %p87 = por %p85, %p86
      %p88 = scmp.ne.s32.totalorder %s80, %s82
      %p89 = scmp.eq.s32.totalorder %s30, 1
      %p90 = por %p88, %p89
      %p91 = scmp.ne.s32.totalorder %s82, %s83
      %p92 = scmp.eq.s32.totalorder %s30, 0
      %p93 = por %p91, %p92
      %p94 = scmp.ne.s32.totalorder %s82, %s83
      %p95 = scmp.eq.s32.totalorder %s31, 1
      %p96 = por %p94, %p95
      %p98 = scmp.ne.s32.totalorder %s83, %s97
      %p99 = scmp.eq.s32.totalorder %s31, 0
      %p100 = por %p98, %p99
      %s102 = sadd.s32 %s101, 1
      %p105 = scmp.eq.s32.totalorder %s25, 1
      %p106 = scmp.ne.s32.totalorder %s101, %s103
      %p107 = scmp.eq.s32.totalorder %s25, 0
      %p108 = por %p106, %p107
      %p109 = scmp.ne.s32.totalorder %s101, %s103
      %p110 = scmp.eq.s32.totalorder %s30, 1
      %p111 = por %p109, %p110
      %p112 = scmp.ne.s32.totalorder %s103, %s104
      %p113 = scmp.eq.s32.totalorder %s30, 0
      %p114 = por %p112, %p113
      %p115 = scmp.ne.s32.totalorder %s103, %s104
      %p116 = scmp.eq.s32.totalorder %s31, 1
      %p117 = por %p115, %p116
      %p119 = scmp.ne.s32.totalorder %s104, %s118
      %p120 = scmp.eq.s32.totalorder %s31, 0
      %p121 = por %p119, %p120
      %s123 = sadd.s32 %s122, 1
      %p126 = scmp.eq.s32.totalorder %s25, 1
      %p127 = scmp.ne.s32.totalorder %s122, %s124
      %p128 = scmp.eq.s32.totalorder %s25, 0
      %p129 = por %p127, %p128
      %p130 = scmp.ne.s32.totalorder %s122, %s124
      %p131 = scmp.eq.s32.totalorder %s30, 1
      %p132 = por %p130, %p131
      %p133 = scmp.ne.s32.totalorder %s124, %s125
      %p134 = scmp.eq.s32.totalorder %s30, 0
      %p135 = por %p133, %p134
      %p136 = scmp.ne.s32.totalorder %s124, %s125
      %p137 = scmp.eq.s32.totalorder %s31, 1
      %p138 = por %p136, %p137
      %p140 = scmp.ne.s32.totalorder %s125, %s139
      %p141 = scmp.eq.s32.totalorder %s31, 0
      %p142 = por %p140, %p141
      %s144 = sadd.s32 %s143, 1
      %p147 = scmp.eq.s32.totalorder %s25, 1
      %p148 = scmp.ne.s32.totalorder %s143, %s145
      %p149 = scmp.eq.s32.totalorder %s25, 0
      %p150 = por %p148, %p149
      %p151 = scmp.ne.s32.totalorder %s143, %s145
      %p152 = scmp.eq.s32.totalorder %s30, 1
      %p153 = por %p151, %p152
      %p154 = scmp.ne.s32.totalorder %s145, %s146
      %p155 = scmp.eq.s32.totalorder %s30, 0
      %p156 = por %p154, %p155
      %p157 = scmp.ne.s32.totalorder %s145, %s146
      %p158 = scmp.eq.s32.totalorder %s31, 1
      %p159 = por %p157, %p158
      %p161 = scmp.ne.s32.totalorder %s146, %s160
      %p162 = scmp.eq.s32.totalorder %s31, 0
      %p163 = por %p161, %p162
      %s165 = sadd.s32 %s164, 1
      %p168 = scmp.eq.s32.totalorder %s25, 1
      %p169 = scmp.ne.s32.totalorder %s164, %s166
      %p170 = scmp.eq.s32.totalorder %s25, 0
      %p171 = por %p169, %p170
      %p172 = scmp.ne.s32.totalorder %s164, %s166
      %p173 = scmp.eq.s32.totalorder %s30, 1
      %p174 = por %p172, %p173
      %p175 = scmp.ne.s32.totalorder %s166, %s167
      %p176 = scmp.eq.s32.totalorder %s30, 0
      %p177 = por %p175, %p176
      %p178 = scmp.ne.s32.totalorder %s166, %s167
      %p179 = scmp.eq.s32.totalorder %s31, 1
      %p180 = por %p178, %p179
      %p182 = scmp.ne.s32.totalorder %s167, %s181
      %p183 = scmp.eq.s32.totalorder %s31, 0
      %p184 = por %p182, %p183
      %s186 = sadd.s32 %s185, 1
      %p189 = scmp.eq.s32.totalorder %s25, 1
      %p190 = scmp.ne.s32.totalorder %s185, %s187
      %p191 = scmp.eq.s32.totalorder %s25, 0
      %p192 = por %p190, %p191
      %p193 = scmp.ne.s32.totalorder %s185, %s187
      %p194 = scmp.eq.s32.totalorder %s30, 1
      %p195 = por %p193, %p194
      %p196 = scmp.ne.s32.totalorder %s187, %s188
      %p197 = scmp.eq.s32.totalorder %s30, 0
      %p198 = por %p196, %p197
      %p199 = scmp.ne.s32.totalorder %s187, %s188
      %p200 = scmp.eq.s32.totalorder %s31, 1
      %p201 = por %p199, %p200
      %p203 = scmp.ne.s32.totalorder %s188, %s202
      %p204 = scmp.eq.s32.totalorder %s31, 0
      %p205 = por %p203, %p204
      %s207 = sadd.s32 %s206, 1
      %p210 = scmp.eq.s32.totalorder %s25, 1
      %p211 = scmp.ne.s32.totalorder %s206, %s208
      %p212 = scmp.eq.s32.totalorder %s25, 0
      %p213 = por %p211, %p212
      %p214 = scmp.ne.s32.totalorder %s206, %s208
      %p215 = scmp.eq.s32.totalorder %s30, 1
      %p216 = por %p214, %p215
      %p217 = scmp.ne.s32.totalorder %s208, %s209
      %p218 = scmp.eq.s32.totalorder %s30, 0
      %p219 = por %p217, %p218
      %p220 = scmp.ne.s32.totalorder %s208, %s209
      %p221 = scmp.eq.s32.totalorder %s31, 1
      %p222 = por %p220, %p221
      %p224 = scmp.ne.s32.totalorder %s209, %s223
      %p225 = scmp.eq.s32.totalorder %s31, 0
      %p226 = por %p224, %p225
      %s228 = sadd.s32 %s227, 1
      %p231 = scmp.eq.s32.totalorder %s25, 1
      %p232 = scmp.ne.s32.totalorder %s227, %s229
      %p233 = scmp.eq.s32.totalorder %s25, 0
      %p234 = por %p232, %p233
      %p235 = scmp.ne.s32.totalorder %s227, %s229
      %p236 = scmp.eq.s32.totalorder %s30, 1
      %p237 = por %p235, %p236
      %p238 = scmp.ne.s32.totalorder %s229, %s230
      %p239 = scmp.eq.s32.totalorder %s30, 0
      %p240 = por %p238, %p239
      %p241 = scmp.ne.s32.totalorder %s229, %s230
      %p242 = scmp.eq.s32.totalorder %s31, 1
      %p243 = por %p241, %p242
      %p245 = scmp.ne.s32.totalorder %s230, %s244
      %p246 = scmp.eq.s32.totalorder %s31, 0
      %p247 = por %p245, %p246
      %s249 = sadd.s32 %s248, 1
      %p252 = scmp.eq.s32.totalorder %s25, 1
      %p253 = scmp.ne.s32.totalorder %s248, %s250
      %p254 = scmp.eq.s32.totalorder %s25, 0
      %p255 = por %p253, %p254
      %p256 = scmp.ne.s32.totalorder %s248, %s250
      %p257 = scmp.eq.s32.totalorder %s30, 1
      %p258 = por %p256, %p257
      %p259 = scmp.ne.s32.totalorder %s250, %s251
      %p260 = scmp.eq.s32.totalorder %s30, 0
      %p261 = por %p259, %p260
      %p262 = scmp.ne.s32.totalorder %s250, %s251
      %p263 = scmp.eq.s32.totalorder %s31, 1
      %p264 = por %p262, %p263
      %p266 = scmp.ne.s32.totalorder %s251, %s265
      %p267 = scmp.eq.s32.totalorder %s31, 0
      %p268 = por %p266, %p267
      %s270 = sadd.s32 %s269, 1
      %p273 = scmp.eq.s32.totalorder %s25, 1
      %p274 = scmp.ne.s32.totalorder %s269, %s271
      %p275 = scmp.eq.s32.totalorder %s25, 0
      %p276 = por %p274, %p275
      %p277 = scmp.ne.s32.totalorder %s269, %s271
      %p278 = scmp.eq.s32.totalorder %s30, 1
      %p279 = por %p277, %p278
      %p280 = scmp.ne.s32.totalorder %s271, %s272
      %p281 = scmp.eq.s32.totalorder %s30, 0
      %p282 = por %p280, %p281
      %p283 = scmp.ne.s32.totalorder %s271, %s272
      %p284 = scmp.eq.s32.totalorder %s31, 1
      %p285 = por %p283, %p284
      %p287 = scmp.ne.s32.totalorder %s272, %s286
      %p288 = scmp.eq.s32.totalorder %s31, 0
      %p289 = por %p287, %p288
      %s291 = sadd.s32 %s290, 1
      %p294 = scmp.eq.s32.totalorder %s25, 1
      %p295 = scmp.ne.s32.totalorder %s290, %s292
      %p296 = scmp.eq.s32.totalorder %s25, 0
      %p297 = por %p295, %p296
      %p298 = scmp.ne.s32.totalorder %s290, %s292
      %p299 = scmp.eq.s32.totalorder %s30, 1
      %p300 = por %p298, %p299
      %p301 = scmp.ne.s32.totalorder %s292, %s293
      %p302 = scmp.eq.s32.totalorder %s30, 0
      %p303 = por %p301, %p302
      %p304 = scmp.ne.s32.totalorder %s292, %s293
      %p305 = scmp.eq.s32.totalorder %s31, 1
      %p306 = por %p304, %p305
      %p308 = scmp.ne.s32.totalorder %s293, %s307
      %p309 = scmp.eq.s32.totalorder %s31, 0
      %p310 = por %p308, %p309
      %s311 = ssub.s32 %s25, %s32
      %p312 = scmp.eq.s32.totalorder %s311, 0
      %s314 = sadd.s32 %s313, 1
      %s315 = scalar_select %p312, %s313, %s314
      %p318 = pneg %p312
      %p319 = scmp.eq.s32.totalorder %s25, 1
      %p320 = por %p318, %p319
      %p321 = scmp.ne.s32.totalorder %s313, %s316
      %p322 = scmp.eq.s32.totalorder %s25, 0
      %p323 = por %p321, %p322
      %p324 = scmp.ne.s32.totalorder %s313, %s316
      %p325 = scmp.eq.s32.totalorder %s30, 1
      %p326 = por %p324, %p325
      %p327 = scmp.ne.s32.totalorder %s316, %s317
      %p328 = scmp.eq.s32.totalorder %s30, 0
      %p329 = por %p327, %p328
      %p330 = scmp.ne.s32.totalorder %s316, %s317
      %p331 = scmp.eq.s32.totalorder %s31, 1
      %p332 = por %p330, %p331
      %p334 = scmp.ne.s32.totalorder %s317, %s333
      %p335 = scmp.eq.s32.totalorder %s31, 0
      %p336 = por %p334, %p335
      %p337 = scmp.le.s32.totalorder 1, %s25
      %p338 = scmp.lt.s32.totalorder %s25, 3
      %p339 = pnand %p337, %p338
      %p340 = pneg %p339
      // Predicated region
      $region9: #{_lambda_.1} parent=5 // pred_check
        _
      $region10: #{_lambda_.1} parent=5 // pred_check_branch
        %342 = sbr.rel (%p339) target = $region12
      $region11: #{_lambda_.1} parent=5 // pred_region
        %s343 = ssub.s32 %s25, 1
        // Predicated region
        $region13: #{_lambda_.1} parent=11 // pred_check
          %p344 = pneg %p72
        $region14: #{_lambda_.1} parent=11 // pred_check_branch
          %346 = sbr.rel (%p344) target = $region16
        $region15: #{_lambda_.1} parent=11 // pred_region
          _
        $region16: #{_lambda_.1} parent=11 // pred_fallthru
          _
        // Predicated region
        $region17: #{_lambda_.1} parent=11 // pred_check
          %p347 = pneg %p93
        $region18: #{_lambda_.1} parent=11 // pred_check_branch
          %349 = sbr.rel (%p347) target = $region20
        $region19: #{_lambda_.1} parent=11 // pred_region
          _
        $region20: #{_lambda_.1} parent=11 // pred_fallthru
          _
        // Predicated region
        $region21: #{_lambda_.1} parent=11 // pred_check
          %p350 = pneg %p114
        $region22: #{_lambda_.1} parent=11 // pred_check_branch
          %352 = sbr.rel (%p350) target = $region24
        $region23: #{_lambda_.1} parent=11 // pred_region
          %354 = vsyncadd [#allocation9], 0
          %s355 = sshll.u32 %s3, 4
          %s356 = int_to_ptr.hbm [resolvable:$true] %s355
          %s357 = sshll.u32 [#allocation8], 4
          %s358 = int_to_ptr.vmem [resolvable:$true] %s357
          %363 = dma.hbm_to_vmem [thread:$0]  %s356, 1536, %s358, [#allocation9], 128, 128, 8
        $region24: #{_lambda_.1} parent=11 // pred_fallthru
          _
        // Predicated region
        $region25: #{_lambda_.1} parent=11 // pred_check
          %p364 = pneg %p135
        $region26: #{_lambda_.1} parent=11 // pred_check_branch
          %366 = sbr.rel (%p364) target = $region28
        $region27: #{_lambda_.1} parent=11 // pred_region
          _
        $region28: #{_lambda_.1} parent=11 // pred_fallthru
          _
        // Predicated region
        $region29: #{_lambda_.1} parent=11 // pred_check
          %p367 = pneg %p156
        $region30: #{_lambda_.1} parent=11 // pred_check_branch
          %369 = sbr.rel (%p367) target = $region32
        $region31: #{_lambda_.1} parent=11 // pred_region
          _
        $region32: #{_lambda_.1} parent=11 // pred_fallthru
          _
        // Predicated region
        $region33: #{_lambda_.1} parent=11 // pred_check
          %p370 = pneg %p177
        $region34: #{_lambda_.1} parent=11 // pred_check_branch
          %372 = sbr.rel (%p370) target = $region36
        $region35: #{_lambda_.1} parent=11 // pred_region
          _
        $region36: #{_lambda_.1} parent=11 // pred_fallthru
          _
        // Predicated region
        $region37: #{_lambda_.1} parent=11 // pred_check
          %p373 = pneg %p198
        $region38: #{_lambda_.1} parent=11 // pred_check_branch
          %375 = sbr.rel (%p373) target = $region40
        $region39: #{_lambda_.1} parent=11 // pred_region
          %377 = vsyncadd [#allocation12], 0
          %s378 = sshll.u32 %s7, 4
          %s379 = int_to_ptr.hbm [resolvable:$true] %s378
          %s380 = sshll.u32 [#allocation11], 4
          %s381 = int_to_ptr.vmem [resolvable:$true] %s380
          %386 = dma.hbm_to_vmem [thread:$0]  %s379, 3072, %s381, [#allocation12], 128, 128, 8
        $region40: #{_lambda_.1} parent=11 // pred_fallthru
          _
        // Predicated region
        $region41: #{_lambda_.1} parent=11 // pred_check
          %p387 = pneg %p219
        $region42: #{_lambda_.1} parent=11 // pred_check_branch
          %389 = sbr.rel (%p387) target = $region44
        $region43: #{_lambda_.1} parent=11 // pred_region
          _
        $region44: #{_lambda_.1} parent=11 // pred_fallthru
          _
        // Predicated region
        $region45: #{_lambda_.1} parent=11 // pred_check
          %p390 = pneg %p240
        $region46: #{_lambda_.1} parent=11 // pred_check_branch
          %392 = sbr.rel (%p390) target = $region48
        $region47: #{_lambda_.1} parent=11 // pred_region
          %394 = vsyncadd [#allocation12], 0
          %s395 = sshll.u32 %s9, 4
          %s396 = int_to_ptr.hbm [resolvable:$true] %s395
          %s397 = sshll.u32 [#allocation13], 4
          %s398 = int_to_ptr.vmem [resolvable:$true] %s397
          %403 = dma.hbm_to_vmem [thread:$0]  %s396, 3072, %s398, [#allocation12], 128, 128, 8
        $region48: #{_lambda_.1} parent=11 // pred_fallthru
          _
        // Predicated region
        $region49: #{_lambda_.1} parent=11 // pred_check
          %p404 = pneg %p261
        $region50: #{_lambda_.1} parent=11 // pred_check_branch
          %406 = sbr.rel (%p404) target = $region52
        $region51: #{_lambda_.1} parent=11 // pred_region
          _
        $region52: #{_lambda_.1} parent=11 // pred_fallthru
          _
        // Predicated region
        $region53: #{_lambda_.1} parent=11 // pred_check
          %p407 = pneg %p282
        $region54: #{_lambda_.1} parent=11 // pred_check_branch
          %409 = sbr.rel (%p407) target = $region56
        $region55: #{_lambda_.1} parent=11 // pred_region
          %411 = vsyncadd [#allocation15], 0
          %s412 = sshll.u32 %s11, 4
          %s413 = int_to_ptr.hbm [resolvable:$true] %s412
          %s414 = sshll.u32 [#allocation14], 4
          %s415 = int_to_ptr.vmem [resolvable:$true] %s414
          %420 = dma.hbm_to_vmem [thread:$0]  %s413, 12288, %s415, [#allocation15], 256, 256, 16
        $region56: #{_lambda_.1} parent=11 // pred_fallthru
          _
        // Predicated region
        $region57: #{_lambda_.1} parent=11 // pred_check
          %p421 = pneg %p303
        $region58: #{_lambda_.1} parent=11 // pred_check_branch
          %423 = sbr.rel (%p421) target = $region60
        $region59: #{_lambda_.1} parent=11 // pred_region
          _
        $region60: #{_lambda_.1} parent=11 // pred_fallthru
          _
      $region12: #{_lambda_.1} parent=5 // pred_fallthru
        _
      %p424 = scmp.lt.s32.totalorder %s25, 2
      // Predicated region
      $region61: #{_lambda_.1} parent=5 // pred_check
        %p425 = pneg %p424
      $region62: #{_lambda_.1} parent=5 // pred_check_branch
        %427 = sbr.rel (%p425) target = $region64
      $region63: #{_lambda_.1} parent=5 // pred_region
        // Predicated region
        $region65: #{_lambda_.1} parent=63 // pred_check
          %p428 = pneg %p45
        $region66: #{_lambda_.1} parent=63 // pred_check_branch
          %430 = sbr.rel (%p428) target = $region68
        $region67: #{_lambda_.1} parent=63 // pred_region
          %p431 = scmp.lt.s32.totalorder %s25, 1
          %s432 = scalar_select %p431, %s25, 1
          %s433 = smul.addr %s432, 8
          %s434 = smul.addr %s433, 8
          %s435 = scalar_lea.vmem %s0, %s434
        $region68: #{_lambda_.1} parent=63 // pred_fallthru
          _
      $region64: #{_lambda_.1} parent=5 // pred_fallthru
        _
      %p436 = scmp.le.s32.totalorder 1, %s25
      %p437 = scmp.lt.s32.totalorder %s25, 3
      %p438 = pnand %p436, %p437
      %p439 = pneg %p438
      // Predicated region
      $region69: #{_lambda_.1} parent=5 // pred_check
        _
      $region70: #{_lambda_.1} parent=5 // pred_check_branch
        %441 = sbr.rel (%p438) target = $region72
      $region71: #{_lambda_.1} parent=5 // pred_region
        %s442 = ssub.s32 %s25, 1
        // Predicated region
        $region73: #{_lambda_.1} parent=71 // pred_check
          %p443 = pneg %p114
        $region74: #{_lambda_.1} parent=71 // pred_check_branch
          %445 = sbr.rel (%p443) target = $region76
        $region75: #{_lambda_.1} parent=71 // pred_region
          %447 = dma.done [#allocation9], 1536
        $region76: #{_lambda_.1} parent=71 // pred_fallthru
          _
        // Predicated region
        $region77: #{_lambda_.1} parent=71 // pred_check
          %p448 = pneg %p198
        $region78: #{_lambda_.1} parent=71 // pred_check_branch
          %450 = sbr.rel (%p448) target = $region80
        $region79: #{_lambda_.1} parent=71 // pred_region
          %452 = dma.done [#allocation12], 3072
        $region80: #{_lambda_.1} parent=71 // pred_fallthru
          _
        // Predicated region
        $region81: #{_lambda_.1} parent=71 // pred_check
          %p453 = pneg %p240
        $region82: #{_lambda_.1} parent=71 // pred_check_branch
          %455 = sbr.rel (%p453) target = $region84
        $region83: #{_lambda_.1} parent=71 // pred_region
          %457 = dma.done [#allocation12], 3072
        $region84: #{_lambda_.1} parent=71 // pred_fallthru
          _
        // Predicated region
        $region85: #{_lambda_.1} parent=71 // pred_check
          %p458 = pneg %p282
        $region86: #{_lambda_.1} parent=71 // pred_check_branch
          %460 = sbr.rel (%p458) target = $region88
        $region87: #{_lambda_.1} parent=71 // pred_region
          %462 = dma.done [#allocation15], 12288
        $region88: #{_lambda_.1} parent=71 // pred_fallthru
          _
        %p463 = scmp.lt.s32.totalorder %s30, 1
        %s464 = scalar_select %p463, %s30, 1
        %s465 = smul.addr %s464, 8
        %s466 = smul.addr %s465, 8
        %s467 = scalar_lea.vmem %s0, %s466
        %p468 = pneg %p51
        %p469 = pneg %p48
        %p470 = pneg %p72
        %p471 = pneg %p69
        %p472 = pneg %p93
        %p473 = pneg %p90
        %p474 = pneg %p114
        %p475 = pneg %p111
        %p476 = pneg %p135
        %p477 = pneg %p132
        %p478 = pneg %p156
        %p479 = pneg %p153
        %p480 = pneg %p177
        %p481 = pneg %p174
        %p482 = pneg %p198
        %p483 = pneg %p195
        %p484 = pneg %p219
        %p485 = pneg %p216
        %p486 = pneg %p240
        %p487 = pneg %p237
        %p488 = pneg %p261
        %p489 = pneg %p258
        %p490 = pneg %p282
        %p491 = pneg %p279
        %p492 = pneg %p303
        %p493 = pneg %p300
        %p494 = pneg %p329
        %p495 = pneg %p326
        %s496 = sand.u32 %s316, 1
        %s497 = scalar_lea.sflag [#allocation10], %s496
        %s498 = sand.u32 %s316, 1
        %s499 = smul.addr %s498, 8
        %s500 = scalar_lea.vmem [#allocation16], %s499
        %p501 = scmp.lt.s32.totalorder %s30, 1
        %s502 = scalar_select %p501, %s30, 1
        %s503 = smul.addr %s502, 8
        %s504 = smul.addr %s503, 8
        %s505 = scalar_lea.vmem %s0, %s504
        %v506 = vld [vmem:[%s505] sm:$0xff]
        %v507 = vld [vmem:[%s505 + $0x8] sm:$0xff]
        %v508 = vld [vmem:[%s505 + $0x10] sm:$0xff]
        %v509 = vld [vmem:[%s505 + $0x18] sm:$0xff]
        %v510 = vld [vmem:[%s505 + $0x20] sm:$0xff]
        %v511 = vld [vmem:[%s505 + $0x28] sm:$0xff]
        %v512 = vld [vmem:[%s505 + $0x30] sm:$0xff]
        %v513 = vld [vmem:[%s505 + $0x38] sm:$0xff]
        %vm514 = vcmask 0
        %515 = vst.msk [vmem:[#allocation2] sm:$0x1] %vm514, 0.0
        %516 = vst.msk [vmem:[#allocation2 + $0x41] sm:$0x1] %vm514, 0.0
        %vm517 = vcmask 7168
        %518 = vst.msk [vmem:[#allocation2 + $0x1] sm:$0xff] %vm517, %v506
        %519 = vst.msk [vmem:[#allocation2 + $0x9] sm:$0xff] %vm517, %v507
        %520 = vst.msk [vmem:[#allocation2 + $0x11] sm:$0xff] %vm517, %v508
        %521 = vst.msk [vmem:[#allocation2 + $0x19] sm:$0xff] %vm517, %v509
        %522 = vst.msk [vmem:[#allocation2 + $0x21] sm:$0xff] %vm517, %v510
        %523 = vst.msk [vmem:[#allocation2 + $0x29] sm:$0xff] %vm517, %v511
        %524 = vst.msk [vmem:[#allocation2 + $0x31] sm:$0xff] %vm517, %v512
        %525 = vst.msk [vmem:[#allocation2 + $0x39] sm:$0xff] %vm517, %v513
        %v526 = vld [vmem:[#allocation2] sm:$0xff]
        %v527 = vld [vmem:[#allocation2 + $0x8] sm:$0xff]
        %v528 = vld [vmem:[#allocation2 + $0x10] sm:$0xff]
        %v529 = vld [vmem:[#allocation2 + $0x18] sm:$0xff]
        %v530 = vld [vmem:[#allocation2 + $0x20] sm:$0xff]
        %v531 = vld [vmem:[#allocation2 + $0x28] sm:$0xff]
        %v532 = vld [vmem:[#allocation2 + $0x30] sm:$0xff]
        %v533 = vld [vmem:[#allocation2 + $0x38] sm:$0xff]
        %v534 = vld [vmem:[%s1] sm:$0x1]
        %536 = vset.pattern.permute.xlu0 0
        %537 = vperm.xlu0 %536, %v526
        %v538 = vpop.permute.xlu0 %537
        %541 = vset.pattern.permute.xlu0 0
        %542 = vperm.xlu0 %541, %v527
        %v543 = vpop.permute.xlu0 %542
        %546 = vset.pattern.permute.xlu0 0
        %547 = vperm.xlu0 %546, %v528
        %v548 = vpop.permute.xlu0 %547
        %551 = vset.pattern.permute.xlu0 0
        %552 = vperm.xlu0 %551, %v529
        %v553 = vpop.permute.xlu0 %552
        %556 = vset.pattern.permute.xlu0 0
        %557 = vperm.xlu0 %556, %v530
        %v558 = vpop.permute.xlu0 %557
        %561 = vset.pattern.permute.xlu0 0
        %562 = vperm.xlu0 %561, %v531
        %v563 = vpop.permute.xlu0 %562
        %566 = vset.pattern.permute.xlu0 0
        %567 = vperm.xlu0 %566, %v532
        %v568 = vpop.permute.xlu0 %567
        %571 = vset.pattern.permute.xlu0 0
        %572 = vperm.xlu0 %571, %v533
        %v573 = vpop.permute.xlu0 %572
        %v576 = vperm.slane %v534, 0
        %v578 = vmul.f32 %v538, %v576
        %v579 = vmul.f32 %v543, %v576
        %v580 = vmul.f32 %v548, %v576
        %v581 = vmul.f32 %v553, %v576
        %v582 = vmul.f32 %v558, %v576
        %v583 = vmul.f32 %v563, %v576
        %v584 = vmul.f32 %v568, %v576
        %v585 = vmul.f32 %v573, %v576
        %v586 = vadd.f32 %v578, 0.0
        %v587 = vadd.f32 %v579, 0.0
        %v588 = vadd.f32 %v580, 0.0
        %v589 = vadd.f32 %v581, 0.0
        %v590 = vadd.f32 %v582, 0.0
        %v591 = vadd.f32 %v583, 0.0
        %v592 = vadd.f32 %v584, 0.0
        %v593 = vadd.f32 %v585, 0.0
        %v594 = vld [vmem:[#allocation2 + $0x1] sm:$0xff]
        %v595 = vld [vmem:[#allocation2 + $0x9] sm:$0xff]
        %v596 = vld [vmem:[#allocation2 + $0x11] sm:$0xff]
        %v597 = vld [vmem:[#allocation2 + $0x19] sm:$0xff]
        %v598 = vld [vmem:[#allocation2 + $0x21] sm:$0xff]
        %v599 = vld [vmem:[#allocation2 + $0x29] sm:$0xff]
        %v600 = vld [vmem:[#allocation2 + $0x31] sm:$0xff]
        %v601 = vld [vmem:[#allocation2 + $0x39] sm:$0xff]
        %s602 = scalar_lea.vmem %s1, 1
        %v603 = vld [vmem:[%s602] sm:$0x1]
        %605 = vset.pattern.permute.xlu0 0
        %606 = vperm.xlu0 %605, %v594
        %v607 = vpop.permute.xlu0 %606
        %610 = vset.pattern.permute.xlu0 0
        %611 = vperm.xlu0 %610, %v595
        %v612 = vpop.permute.xlu0 %611
        %615 = vset.pattern.permute.xlu0 0
        %616 = vperm.xlu0 %615, %v596
        %v617 = vpop.permute.xlu0 %616
        %620 = vset.pattern.permute.xlu0 0
        %621 = vperm.xlu0 %620, %v597
        %v622 = vpop.permute.xlu0 %621
        %625 = vset.pattern.permute.xlu0 0
        %626 = vperm.xlu0 %625, %v598
        %v627 = vpop.permute.xlu0 %626
        %630 = vset.pattern.permute.xlu0 0
        %631 = vperm.xlu0 %630, %v599
        %v632 = vpop.permute.xlu0 %631
        %635 = vset.pattern.permute.xlu0 0
        %636 = vperm.xlu0 %635, %v600
        %v637 = vpop.permute.xlu0 %636
        %640 = vset.pattern.permute.xlu0 0
        %641 = vperm.xlu0 %640, %v601
        %v642 = vpop.permute.xlu0 %641
        %v645 = vperm.slane %v603, 0
        %v647 = vmul.f32 %v607, %v645
        %v648 = vmul.f32 %v612, %v645
        %v649 = vmul.f32 %v617, %v645
        %v650 = vmul.f32 %v622, %v645
        %v651 = vmul.f32 %v627, %v645
        %v652 = vmul.f32 %v632, %v645
        %v653 = vmul.f32 %v637, %v645
        %v654 = vmul.f32 %v642, %v645
        %v655 = vadd.f32 %v586, %v647
        %v656 = vadd.f32 %v587, %v648
        %v657 = vadd.f32 %v588, %v649
        %v658 = vadd.f32 %v589, %v650
        %v659 = vadd.f32 %v590, %v651
        %v660 = vadd.f32 %v591, %v652
        %v661 = vadd.f32 %v592, %v653
        %v662 = vadd.f32 %v593, %v654
        %v663 = vld [vmem:[#allocation2 + $0x2] sm:$0xff]
        %v664 = vld [vmem:[#allocation2 + $0xa] sm:$0xff]
        %v665 = vld [vmem:[#allocation2 + $0x12] sm:$0xff]
        %v666 = vld [vmem:[#allocation2 + $0x1a] sm:$0xff]
        %v667 = vld [vmem:[#allocation2 + $0x22] sm:$0xff]
        %v668 = vld [vmem:[#allocation2 + $0x2a] sm:$0xff]
        %v669 = vld [vmem:[#allocation2 + $0x32] sm:$0xff]
        %v670 = vld [vmem:[#allocation2 + $0x3a] sm:$0xff]
        %s671 = scalar_lea.vmem %s1, 2
        %v672 = vld [vmem:[%s671] sm:$0x1]
        %674 = vset.pattern.permute.xlu0 0
        %675 = vperm.xlu0 %674, %v663
        %v676 = vpop.permute.xlu0 %675
        %679 = vset.pattern.permute.xlu0 0
        %680 = vperm.xlu0 %679, %v664
        %v681 = vpop.permute.xlu0 %680
        %684 = vset.pattern.permute.xlu0 0
        %685 = vperm.xlu0 %684, %v665
        %v686 = vpop.permute.xlu0 %685
        %689 = vset.pattern.permute.xlu0 0
        %690 = vperm.xlu0 %689, %v666
        %v691 = vpop.permute.xlu0 %690
        %694 = vset.pattern.permute.xlu0 0
        %695 = vperm.xlu0 %694, %v667
        %v696 = vpop.permute.xlu0 %695
        %699 = vset.pattern.permute.xlu0 0
        %700 = vperm.xlu0 %699, %v668
        %v701 = vpop.permute.xlu0 %700
        %704 = vset.pattern.permute.xlu0 0
        %705 = vperm.xlu0 %704, %v669
        %v706 = vpop.permute.xlu0 %705
        %709 = vset.pattern.permute.xlu0 0
        %710 = vperm.xlu0 %709, %v670
        %v711 = vpop.permute.xlu0 %710
        %v714 = vperm.slane %v672, 0
        %v716 = vmul.f32 %v676, %v714
        %v717 = vmul.f32 %v681, %v714
        %v718 = vmul.f32 %v686, %v714
        %v719 = vmul.f32 %v691, %v714
        %v720 = vmul.f32 %v696, %v714
        %v721 = vmul.f32 %v701, %v714
        %v722 = vmul.f32 %v706, %v714
        %v723 = vmul.f32 %v711, %v714
        %v724 = vadd.f32 %v655, %v716
        %v725 = vadd.f32 %v656, %v717
        %v726 = vadd.f32 %v657, %v718
        %v727 = vadd.f32 %v658, %v719
        %v728 = vadd.f32 %v659, %v720
        %v729 = vadd.f32 %v660, %v721
        %v730 = vadd.f32 %v661, %v722
        %v731 = vadd.f32 %v662, %v723
        %v732 = vld [vmem:[%s2] sm:$0x1]
        %v734 = vperm.slane %v732, 0
        %v736 = vadd.f32 %v724, %v734
        %v737 = vadd.f32 %v725, %v734
        %v738 = vadd.f32 %v726, %v734
        %v739 = vadd.f32 %v727, %v734
        %v740 = vadd.f32 %v728, %v734
        %v741 = vadd.f32 %v729, %v734
        %v742 = vadd.f32 %v730, %v734
        %v743 = vadd.f32 %v731, %v734
        %v744 = vmax.f32 %v736, 0.0
        %v745 = vmax.f32 %v737, 0.0
        %v746 = vmax.f32 %v738, 0.0
        %v747 = vmax.f32 %v739, 0.0
        %v748 = vmax.f32 %v740, 0.0
        %v749 = vmax.f32 %v741, 0.0
        %v750 = vmax.f32 %v742, 0.0
        %v751 = vmax.f32 %v743, 0.0
        %vm752 = vcmask 253952
        %753 = vst.msk [vmem:[#allocation3] sm:$0x1] %vm752, 0.0
        %754 = vst.msk [vmem:[#allocation3 + $0x41] sm:$0x1] %vm752, 0.0
        %vm755 = vcmask 261120
        %756 = vst.msk [vmem:[#allocation3 + $0x1] sm:$0xff] %vm755, %v744
        %757 = vst.msk [vmem:[#allocation3 + $0x9] sm:$0xff] %vm755, %v745
        %758 = vst.msk [vmem:[#allocation3 + $0x11] sm:$0xff] %vm755, %v746
        %759 = vst.msk [vmem:[#allocation3 + $0x19] sm:$0xff] %vm755, %v747
        %760 = vst.msk [vmem:[#allocation3 + $0x21] sm:$0xff] %vm755, %v748
        %761 = vst.msk [vmem:[#allocation3 + $0x29] sm:$0xff] %vm755, %v749
        %762 = vst.msk [vmem:[#allocation3 + $0x31] sm:$0xff] %vm755, %v750
        %763 = vst.msk [vmem:[#allocation3 + $0x39] sm:$0xff] %vm755, %v751
        %v764 = vld [vmem:[#allocation3] ss:$2 sm:$0xff]
        %s765 = scalar_lea.vmem [#allocation3], 16
        %v766 = vld [vmem:[%s765] ss:$2 sm:$0xff]
        %s767 = scalar_lea.vmem [#allocation3], 32
        %v768 = vld [vmem:[%s767] ss:$2 sm:$0xff]
        %s769 = scalar_lea.vmem [#allocation3], 48
        %v770 = vld [vmem:[%s769] ss:$2 sm:$0xff]
        %v771 = vld [vmem:[#allocation8] sm:$0xff]
        %v772 = vld [vmem:[#allocation8 + $0x8] sm:$0xff]
        %v773 = vld [vmem:[#allocation8 + $0x10] sm:$0xff]
        %v774 = vld [vmem:[#allocation8 + $0x18] sm:$0xff]
        %s775 = scalar_lea.vmem [#allocation3], 1
        %v776 = vld [vmem:[%s775] ss:$2 sm:$0xff]
        %s777 = scalar_lea.vmem [#allocation3], 17
        %v778 = vld [vmem:[%s777] ss:$2 sm:$0xff]
        %s779 = scalar_lea.vmem [#allocation3], 33
        %v780 = vld [vmem:[%s779] ss:$2 sm:$0xff]
        %s781 = scalar_lea.vmem [#allocation3], 49
        %v782 = vld [vmem:[%s781] ss:$2 sm:$0xff]
        %s783 = scalar_lea.vmem [#allocation8], 32
        %v784 = vld [vmem:[%s783] sm:$0xff]
        %v785 = vld [vmem:[%s783 + $0x8] sm:$0xff]
        %v786 = vld [vmem:[%s783 + $0x10] sm:$0xff]
        %v787 = vld [vmem:[%s783 + $0x18] sm:$0xff]
        %v789 = vsel %vm755, %v776, 0
        %v792 = vsel %vm755, %v778, 0
        %v795 = vsel %vm755, %v780, 0
        %v798 = vsel %vm755, %v782, 0
        %800 = vmatpush.msra.mxu0 0.0
        %801 = vmatpush.msra.mxu0 0.0
        %802 = vmatpush.msra.mxu0 0.0
        %803 = vmatpush.msra.mxu0 0.0
        %804 = vmatpush.msra.mxu0 0.0
        %805 = vmatpush.msra.mxu0 0.0
        %806 = vmatpush.msra.mxu0 0.0
        %807 = vmatpush.msra.mxu0 0.0
        %808 = vmatpush.msra.mxu0 0.0
        %809 = vmatpush.msra.mxu0 0.0
        %810 = vmatpush.msra.mxu0 0.0
        %811 = vmatpush.msra.mxu0 0.0
        %812 = vmatpush.msra.mxu0 %v787
        %813 = vmatpush.msra.mxu0 %v786
        %814 = vmatpush.msra.mxu0 %v785
        %815 = vmatpush.msra.mxu0 %v784
        %816 = vmatmul.f32.gmra.mxu0 %v789
        %v817 = vpop.f32.mrf.mxu0
        %v818 = vadd.f32 0.0, %v817
        %819 = vmatmul.f32.gmra.mxu0 %v792
        %v820 = vpop.f32.mrf.mxu0
        %v821 = vadd.f32 0.0, %v820
        %822 = vmatmul.f32.gmra.mxu0 %v795
        %v823 = vpop.f32.mrf.mxu0
        %v824 = vadd.f32 0.0, %v823
        %825 = vmatmul.f32.gmra.mxu0 %v798
        %v826 = vpop.f32.mrf.mxu0
        %v827 = vadd.f32 0.0, %v826
        %828 = vdwg.mxu0
        %v830 = vsel %vm755, %v764, 0
        %v833 = vsel %vm755, %v766, 0
        %v836 = vsel %vm755, %v768, 0
        %v839 = vsel %vm755, %v770, 0
        %841 = vmatpush.msra.mxu0 0.0
        %842 = vmatpush.msra.mxu0 0.0
        %843 = vmatpush.msra.mxu0 0.0
        %844 = vmatpush.msra.mxu0 0.0
        %845 = vmatpush.msra.mxu0 0.0
        %846 = vmatpush.msra.mxu0 0.0
        %847 = vmatpush.msra.mxu0 0.0
        %848 = vmatpush.msra.mxu0 0.0
        %849 = vmatpush.msra.mxu0 0.0
        %850 = vmatpush.msra.mxu0 0.0
        %851 = vmatpush.msra.mxu0 0.0
        %852 = vmatpush.msra.mxu0 0.0
        %853 = vmatpush.msra.mxu0 %v774
        %854 = vmatpush.msra.mxu0 %v773
        %855 = vmatpush.msra.mxu0 %v772
        %856 = vmatpush.msra.mxu0 %v771
        %857 = vmatmul.f32.gmra.mxu0 %v830
        %v858 = vpop.f32.mrf.mxu0
        %v859 = vadd.f32 %v818, %v858
        %860 = vmatmul.f32.gmra.mxu0 %v833
        %v861 = vpop.f32.mrf.mxu0
        %v862 = vadd.f32 %v821, %v861
        %863 = vmatmul.f32.gmra.mxu0 %v836
        %v864 = vpop.f32.mrf.mxu0
        %v865 = vadd.f32 %v824, %v864
        %866 = vmatmul.f32.gmra.mxu0 %v839
        %v867 = vpop.f32.mrf.mxu0
        %v868 = vadd.f32 %v827, %v867
        %869 = vdwg.mxu0
        %s870 = scalar_lea.vmem [#allocation3], 2
        %v871 = vld [vmem:[%s870] ss:$2 sm:$0xff]
        %s872 = scalar_lea.vmem [#allocation3], 18
        %v873 = vld [vmem:[%s872] ss:$2 sm:$0xff]
        %s874 = scalar_lea.vmem [#allocation3], 34
        %v875 = vld [vmem:[%s874] ss:$2 sm:$0xff]
        %s876 = scalar_lea.vmem [#allocation3], 50
        %v877 = vld [vmem:[%s876] ss:$2 sm:$0xff]
        %v879 = vsel %vm755, %v871, 0
        %v882 = vsel %vm755, %v873, 0
        %v885 = vsel %vm755, %v875, 0
        %v888 = vsel %vm755, %v877, 0
        %890 = vmatpush.msra.mxu0 0.0
        %891 = vmatpush.msra.mxu0 0.0
        %892 = vmatpush.msra.mxu0 0.0
        %893 = vmatpush.msra.mxu0 0.0
        %894 = vmatpush.msra.mxu0 0.0
        %895 = vmatpush.msra.mxu0 0.0
        %896 = vmatpush.msra.mxu0 0.0
        %897 = vmatpush.msra.mxu0 0.0
        %898 = vmatpush.msra.mxu0 0.0
        %899 = vmatpush.msra.mxu0 0.0
        %900 = vmatpush.msra.mxu0 0.0
        %901 = vmatpush.msra.mxu0 0.0
        %902 = vmatpush.msra.mxu0 %v787
        %903 = vmatpush.msra.mxu0 %v786
        %904 = vmatpush.msra.mxu0 %v785
        %905 = vmatpush.msra.mxu0 %v784
        %906 = vmatmul.f32.gmra.mxu0 %v879
        %v907 = vpop.f32.mrf.mxu0
        %v908 = vadd.f32 0.0, %v907
        %909 = vmatmul.f32.gmra.mxu0 %v882
        %v910 = vpop.f32.mrf.mxu0
        %v911 = vadd.f32 0.0, %v910
        %912 = vmatmul.f32.gmra.mxu0 %v885
        %v913 = vpop.f32.mrf.mxu0
        %v914 = vadd.f32 0.0, %v913
        %915 = vmatmul.f32.gmra.mxu0 %v888
        %v916 = vpop.f32.mrf.mxu0
        %v917 = vadd.f32 0.0, %v916
        %918 = vdwg.mxu0
        %919 = vmatpush.msra.mxu0 0.0
        %920 = vmatpush.msra.mxu0 0.0
        %921 = vmatpush.msra.mxu0 0.0
        %922 = vmatpush.msra.mxu0 0.0
        %923 = vmatpush.msra.mxu0 0.0
        %924 = vmatpush.msra.mxu0 0.0
        %925 = vmatpush.msra.mxu0 0.0
        %926 = vmatpush.msra.mxu0 0.0
        %927 = vmatpush.msra.mxu0 0.0
        %928 = vmatpush.msra.mxu0 0.0
        %929 = vmatpush.msra.mxu0 0.0
        %930 = vmatpush.msra.mxu0 0.0
        %931 = vmatpush.msra.mxu0 %v774
        %932 = vmatpush.msra.mxu0 %v773
        %933 = vmatpush.msra.mxu0 %v772
        %934 = vmatpush.msra.mxu0 %v771
        %935 = vmatmul.f32.gmra.mxu0 %v789
        %v936 = vpop.f32.mrf.mxu0
        %v937 = vadd.f32 %v908, %v936
        %938 = vmatmul.f32.gmra.mxu0 %v792
        %v939 = vpop.f32.mrf.mxu0
        %v940 = vadd.f32 %v911, %v939
        %941 = vmatmul.f32.gmra.mxu0 %v795
        %v942 = vpop.f32.mrf.mxu0
        %v943 = vadd.f32 %v914, %v942
        %944 = vmatmul.f32.gmra.mxu0 %v798
        %v945 = vpop.f32.mrf.mxu0
        %v946 = vadd.f32 %v917, %v945
        %947 = vdwg.mxu0
        %s948 = scalar_lea.vmem [#allocation8], 64
        %v949 = vld [vmem:[%s948] sm:$0xff]
        %v950 = vld [vmem:[%s948 + $0x8] sm:$0xff]
        %v951 = vld [vmem:[%s948 + $0x10] sm:$0xff]
        %v952 = vld [vmem:[%s948 + $0x18] sm:$0xff]
        %953 = vmatpush.msra.mxu0 0.0
        %954 = vmatpush.msra.mxu0 0.0
        %955 = vmatpush.msra.mxu0 0.0
        %956 = vmatpush.msra.mxu0 0.0
        %957 = vmatpush.msra.mxu0 0.0
        %958 = vmatpush.msra.mxu0 0.0
        %959 = vmatpush.msra.mxu0 0.0
        %960 = vmatpush.msra.mxu0 0.0
        %961 = vmatpush.msra.mxu0 0.0
        %962 = vmatpush.msra.mxu0 0.0
        %963 = vmatpush.msra.mxu0 0.0
        %964 = vmatpush.msra.mxu0 0.0
        %965 = vmatpush.msra.mxu0 %v952
        %966 = vmatpush.msra.mxu0 %v951
        %967 = vmatpush.msra.mxu0 %v950
        %968 = vmatpush.msra.mxu0 %v949
        %969 = vmatmul.f32.gmra.mxu0 %v879
        %v970 = vpop.f32.mrf.mxu0
        %v971 = vadd.f32 0.0, %v970
        %972 = vmatmul.f32.gmra.mxu0 %v882
        %v973 = vpop.f32.mrf.mxu0
        %v974 = vadd.f32 0.0, %v973
        %975 = vmatmul.f32.gmra.mxu0 %v885
        %v976 = vpop.f32.mrf.mxu0
        %v977 = vadd.f32 0.0, %v976
        %978 = vmatmul.f32.gmra.mxu0 %v888
        %v979 = vpop.f32.mrf.mxu0
        %v980 = vadd.f32 0.0, %v979
        %981 = vdwg.mxu0
        %v982 = vadd.f32 %v859, %v971
        %v983 = vadd.f32 %v862, %v974
        %v984 = vadd.f32 %v865, %v977
        %v985 = vadd.f32 %v868, %v980
        %s986 = scalar_lea.vmem [#allocation3], 3
        %v987 = vld [vmem:[%s986] ss:$2 sm:$0xff]
        %s988 = scalar_lea.vmem [#allocation3], 19
        %v989 = vld [vmem:[%s988] ss:$2 sm:$0xff]
        %s990 = scalar_lea.vmem [#allocation3], 35
        %v991 = vld [vmem:[%s990] ss:$2 sm:$0xff]
        %s992 = scalar_lea.vmem [#allocation3], 51
        %v993 = vld [vmem:[%s992] ss:$2 sm:$0xff]
        %v995 = vsel %vm755, %v987, 0
        %v998 = vsel %vm755, %v989, 0
        %v1001 = vsel %vm755, %v991, 0
        %v1004 = vsel %vm755, %v993, 0
        %1006 = vmatpush.msra.mxu0 0.0
        %1007 = vmatpush.msra.mxu0 0.0
        %1008 = vmatpush.msra.mxu0 0.0
        %1009 = vmatpush.msra.mxu0 0.0
        %1010 = vmatpush.msra.mxu0 0.0
        %1011 = vmatpush.msra.mxu0 0.0
        %1012 = vmatpush.msra.mxu0 0.0
        %1013 = vmatpush.msra.mxu0 0.0
        %1014 = vmatpush.msra.mxu0 0.0
        %1015 = vmatpush.msra.mxu0 0.0
        %1016 = vmatpush.msra.mxu0 0.0
        %1017 = vmatpush.msra.mxu0 0.0
        %1018 = vmatpush.msra.mxu0 %v952
        %1019 = vmatpush.msra.mxu0 %v951
        %1020 = vmatpush.msra.mxu0 %v950
        %1021 = vmatpush.msra.mxu0 %v949
        %1022 = vmatmul.f32.gmra.mxu0 %v995
        %v1023 = vpop.f32.mrf.mxu0
        %v1024 = vadd.f32 0.0, %v1023
        %1025 = vmatmul.f32.gmra.mxu0 %v998
        %v1026 = vpop.f32.mrf.mxu0
        %v1027 = vadd.f32 0.0, %v1026
        %1028 = vmatmul.f32.gmra.mxu0 %v1001
        %v1029 = vpop.f32.mrf.mxu0
        %v1030 = vadd.f32 0.0, %v1029
        %1031 = vmatmul.f32.gmra.mxu0 %v1004
        %v1032 = vpop.f32.mrf.mxu0
        %v1033 = vadd.f32 0.0, %v1032
        %1034 = vdwg.mxu0
        %v1035 = vadd.f32 %v937, %v1024
        %v1036 = vadd.f32 %v940, %v1027
        %v1037 = vadd.f32 %v943, %v1030
        %v1038 = vadd.f32 %v946, %v1033
        %v1039 = vmax.f32 %v982, %v1035
        %v1040 = vmax.f32 %v983, %v1036
        %v1041 = vmax.f32 %v984, %v1037
        %v1042 = vmax.f32 %v985, %v1038
        %v1043 = vld [vmem:[%s4] sm:$0x1]
        %v1045 = vperm.slane %v1043, 0
        %v1047 = vadd.f32 %v1039, %v1045
        %v1048 = vadd.f32 %v1040, %v1045
        %v1049 = vadd.f32 %v1041, %v1045
        %v1050 = vadd.f32 %v1042, %v1045
        %v1051 = vmax.f32 %v1047, 0.0
        %v1052 = vmax.f32 %v1048, 0.0
        %v1053 = vmax.f32 %v1049, 0.0
        %v1054 = vmax.f32 %v1050, 0.0
        %1055 = vst.msk [vmem:[#allocation4] sm:$0x1] %vm752, 0.0
        %1056 = vst.msk [vmem:[#allocation4 + $0x21] sm:$0x1] %vm752, 0.0
        %1057 = vst.msk [vmem:[#allocation4 + $0x1] sm:$0xff] %vm755, %v1051
        %1058 = vst.msk [vmem:[#allocation4 + $0x9] sm:$0xff] %vm755, %v1052
        %1059 = vst.msk [vmem:[#allocation4 + $0x11] sm:$0xff] %vm755, %v1053
        %1060 = vst.msk [vmem:[#allocation4 + $0x19] sm:$0xff] %vm755, %v1054
        %v1061 = vld [vmem:[#allocation4] sm:$0xff]
        %v1062 = vld [vmem:[#allocation4 + $0x8] sm:$0xff]
        %v1063 = vld [vmem:[#allocation4 + $0x10] sm:$0xff]
        %v1064 = vld [vmem:[#allocation4 + $0x18] sm:$0xff]
        %v1065 = vld [vmem:[%s5] sm:$0xff]
        %v1066 = vld [vmem:[%s5 + $0x8] sm:$0xff]
        %v1067 = vld [vmem:[%s5 + $0x10] sm:$0xff]
        %v1068 = vld [vmem:[%s5 + $0x18] sm:$0xff]
        %v1069 = vld [vmem:[#allocation4 + $0x1] sm:$0xff]
        %v1070 = vld [vmem:[#allocation4 + $0x9] sm:$0xff]
        %v1071 = vld [vmem:[#allocation4 + $0x11] sm:$0xff]
        %v1072 = vld [vmem:[#allocation4 + $0x19] sm:$0xff]
        %s1073 = scalar_lea.vmem %s5, 32
        %v1074 = vld [vmem:[%s1073] sm:$0xff]
        %v1075 = vld [vmem:[%s1073 + $0x8] sm:$0xff]
        %v1076 = vld [vmem:[%s1073 + $0x10] sm:$0xff]
        %v1077 = vld [vmem:[%s1073 + $0x18] sm:$0xff]
        %v1079 = vsel %vm755, %v1069, 0
        %v1082 = vsel %vm755, %v1070, 0
        %v1085 = vsel %vm755, %v1071, 0
        %v1088 = vsel %vm755, %v1072, 0
        %1090 = vmatpush.msra.mxu0 0.0
        %1091 = vmatpush.msra.mxu0 0.0
        %1092 = vmatpush.msra.mxu0 0.0
        %1093 = vmatpush.msra.mxu0 0.0
        %1094 = vmatpush.msra.mxu0 0.0
        %1095 = vmatpush.msra.mxu0 0.0
        %1096 = vmatpush.msra.mxu0 0.0
        %1097 = vmatpush.msra.mxu0 0.0
        %1098 = vmatpush.msra.mxu0 0.0
        %1099 = vmatpush.msra.mxu0 0.0
        %1100 = vmatpush.msra.mxu0 0.0
        %1101 = vmatpush.msra.mxu0 0.0
        %1102 = vmatpush.msra.mxu0 %v1077
        %1103 = vmatpush.msra.mxu0 %v1076
        %1104 = vmatpush.msra.mxu0 %v1075
        %1105 = vmatpush.msra.mxu0 %v1074
        %1106 = vmatmul.f32.gmra.mxu0 %v1079
        %v1107 = vpop.f32.mrf.mxu0
        %v1108 = vadd.f32 0.0, %v1107
        %1109 = vmatmul.f32.gmra.mxu0 %v1082
        %v1110 = vpop.f32.mrf.mxu0
        %v1111 = vadd.f32 0.0, %v1110
        %1112 = vmatmul.f32.gmra.mxu0 %v1085
        %v1113 = vpop.f32.mrf.mxu0
        %v1114 = vadd.f32 0.0, %v1113
        %1115 = vmatmul.f32.gmra.mxu0 %v1088
        %v1116 = vpop.f32.mrf.mxu0
        %v1117 = vadd.f32 0.0, %v1116
        %1118 = vdwg.mxu0
        %v1120 = vsel %vm755, %v1061, 0
        %v1123 = vsel %vm755, %v1062, 0
        %v1126 = vsel %vm755, %v1063, 0
        %v1129 = vsel %vm755, %v1064, 0
        %1131 = vmatpush.msra.mxu0 0.0
        %1132 = vmatpush.msra.mxu0 0.0
        %1133 = vmatpush.msra.mxu0 0.0
        %1134 = vmatpush.msra.mxu0 0.0
        %1135 = vmatpush.msra.mxu0 0.0
        %1136 = vmatpush.msra.mxu0 0.0
        %1137 = vmatpush.msra.mxu0 0.0
        %1138 = vmatpush.msra.mxu0 0.0
        %1139 = vmatpush.msra.mxu0 0.0
        %1140 = vmatpush.msra.mxu0 0.0
        %1141 = vmatpush.msra.mxu0 0.0
        %1142 = vmatpush.msra.mxu0 0.0
        %1143 = vmatpush.msra.mxu0 %v1068
        %1144 = vmatpush.msra.mxu0 %v1067
        %1145 = vmatpush.msra.mxu0 %v1066
        %1146 = vmatpush.msra.mxu0 %v1065
        %1147 = vmatmul.f32.gmra.mxu0 %v1120
        %v1148 = vpop.f32.mrf.mxu0
        %v1149 = vadd.f32 %v1108, %v1148
        %1150 = vmatmul.f32.gmra.mxu0 %v1123
        %v1151 = vpop.f32.mrf.mxu0
        %v1152 = vadd.f32 %v1111, %v1151
        %1153 = vmatmul.f32.gmra.mxu0 %v1126
        %v1154 = vpop.f32.mrf.mxu0
        %v1155 = vadd.f32 %v1114, %v1154
        %1156 = vmatmul.f32.gmra.mxu0 %v1129
        %v1157 = vpop.f32.mrf.mxu0
        %v1158 = vadd.f32 %v1117, %v1157
        %1159 = vdwg.mxu0
        %v1160 = vld [vmem:[#allocation4 + $0x2] sm:$0xff]
        %v1161 = vld [vmem:[#allocation4 + $0xa] sm:$0xff]
        %v1162 = vld [vmem:[#allocation4 + $0x12] sm:$0xff]
        %v1163 = vld [vmem:[#allocation4 + $0x1a] sm:$0xff]
        %s1164 = scalar_lea.vmem %s5, 64
        %v1165 = vld [vmem:[%s1164] sm:$0xff]
        %v1166 = vld [vmem:[%s1164 + $0x8] sm:$0xff]
        %v1167 = vld [vmem:[%s1164 + $0x10] sm:$0xff]
        %v1168 = vld [vmem:[%s1164 + $0x18] sm:$0xff]
        %v1170 = vsel %vm755, %v1160, 0
        %v1173 = vsel %vm755, %v1161, 0
        %v1176 = vsel %vm755, %v1162, 0
        %v1179 = vsel %vm755, %v1163, 0
        %1181 = vmatpush.msra.mxu0 0.0
        %1182 = vmatpush.msra.mxu0 0.0
        %1183 = vmatpush.msra.mxu0 0.0
        %1184 = vmatpush.msra.mxu0 0.0
        %1185 = vmatpush.msra.mxu0 0.0
        %1186 = vmatpush.msra.mxu0 0.0
        %1187 = vmatpush.msra.mxu0 0.0
        %1188 = vmatpush.msra.mxu0 0.0
        %1189 = vmatpush.msra.mxu0 0.0
        %1190 = vmatpush.msra.mxu0 0.0
        %1191 = vmatpush.msra.mxu0 0.0
        %1192 = vmatpush.msra.mxu0 0.0
        %1193 = vmatpush.msra.mxu0 %v1168
        %1194 = vmatpush.msra.mxu0 %v1167
        %1195 = vmatpush.msra.mxu0 %v1166
        %1196 = vmatpush.msra.mxu0 %v1165
        %1197 = vmatmul.f32.gmra.mxu0 %v1170
        %v1198 = vpop.f32.mrf.mxu0
        %v1199 = vadd.f32 0.0, %v1198
        %1200 = vmatmul.f32.gmra.mxu0 %v1173
        %v1201 = vpop.f32.mrf.mxu0
        %v1202 = vadd.f32 0.0, %v1201
        %1203 = vmatmul.f32.gmra.mxu0 %v1176
        %v1204 = vpop.f32.mrf.mxu0
        %v1205 = vadd.f32 0.0, %v1204
        %1206 = vmatmul.f32.gmra.mxu0 %v1179
        %v1207 = vpop.f32.mrf.mxu0
        %v1208 = vadd.f32 0.0, %v1207
        %1209 = vdwg.mxu0
        %v1210 = vadd.f32 %v1149, %v1199
        %v1211 = vadd.f32 %v1152, %v1202
        %v1212 = vadd.f32 %v1155, %v1205
        %v1213 = vadd.f32 %v1158, %v1208
        %v1214 = vld [vmem:[%s6] sm:$0x1]
        %v1216 = vperm.slane %v1214, 0
        %v1218 = vadd.f32 %v1210, %v1216
        %v1219 = vadd.f32 %v1211, %v1216
        %v1220 = vadd.f32 %v1212, %v1216
        %v1221 = vadd.f32 %v1213, %v1216
        %v1222 = vmax.f32 %v1218, 0.0
        %v1223 = vmax.f32 %v1219, 0.0
        %v1224 = vmax.f32 %v1220, 0.0
        %v1225 = vmax.f32 %v1221, 0.0
        %vm1226 = vcmask 516096
        %1227 = vst.msk [vmem:[#allocation5] sm:$0x1] %vm1226, 0.0
        %1228 = vst.msk [vmem:[#allocation5 + $0x21] sm:$0x1] %vm1226, 0.0
        %vm1229 = vcmask 523264
        %1230 = vst.msk [vmem:[#allocation5 + $0x1] sm:$0xff] %vm1229, %v1222
        %1231 = vst.msk [vmem:[#allocation5 + $0x9] sm:$0xff] %vm1229, %v1223
        %1232 = vst.msk [vmem:[#allocation5 + $0x11] sm:$0xff] %vm1229, %v1224
        %1233 = vst.msk [vmem:[#allocation5 + $0x19] sm:$0xff] %vm1229, %v1225
        %v1234 = vld [vmem:[#allocation5] ss:$2 sm:$0xff]
        %s1235 = scalar_lea.vmem [#allocation5], 16
        %v1236 = vld [vmem:[%s1235] ss:$2 sm:$0xff]
        %v1237 = vld [vmem:[#allocation11] sm:$0xff]
        %v1238 = vld [vmem:[#allocation11 + $0x8] sm:$0xff]
        %v1239 = vld [vmem:[#allocation11 + $0x10] sm:$0xff]
        %v1240 = vld [vmem:[#allocation11 + $0x18] sm:$0xff]
        %v1241 = vld [vmem:[#allocation11 + $0x20] sm:$0xff]
        %v1242 = vld [vmem:[#allocation11 + $0x28] sm:$0xff]
        %v1243 = vld [vmem:[#allocation11 + $0x30] sm:$0xff]
        %v1244 = vld [vmem:[#allocation11 + $0x38] sm:$0xff]
        %s1245 = scalar_lea.vmem [#allocation5], 1
        %v1246 = vld [vmem:[%s1245] ss:$2 sm:$0xff]
        %s1247 = scalar_lea.vmem [#allocation5], 17
        %v1248 = vld [vmem:[%s1247] ss:$2 sm:$0xff]
        %s1249 = scalar_lea.vmem [#allocation11], 64
        %v1250 = vld [vmem:[%s1249] sm:$0xff]
        %v1251 = vld [vmem:[%s1249 + $0x8] sm:$0xff]
        %v1252 = vld [vmem:[%s1249 + $0x10] sm:$0xff]
        %v1253 = vld [vmem:[%s1249 + $0x18] sm:$0xff]
        %v1254 = vld [vmem:[%s1249 + $0x20] sm:$0xff]
        %v1255 = vld [vmem:[%s1249 + $0x28] sm:$0xff]
        %v1256 = vld [vmem:[%s1249 + $0x30] sm:$0xff]
        %v1257 = vld [vmem:[%s1249 + $0x38] sm:$0xff]
        %v1259 = vsel %vm1229, %v1246, 0
        %v1262 = vsel %vm1229, %v1248, 0
        %1264 = vmatpush.msra.mxu0 0.0
        %1265 = vmatpush.msra.mxu0 0.0
        %1266 = vmatpush.msra.mxu0 0.0
        %1267 = vmatpush.msra.mxu0 0.0
        %1268 = vmatpush.msra.mxu0 0.0
        %1269 = vmatpush.msra.mxu0 0.0
        %1270 = vmatpush.msra.mxu0 0.0
        %1271 = vmatpush.msra.mxu0 0.0
        %1272 = vmatpush.msra.mxu0 %v1257
        %1273 = vmatpush.msra.mxu0 %v1256
        %1274 = vmatpush.msra.mxu0 %v1255
        %1275 = vmatpush.msra.mxu0 %v1254
        %1276 = vmatpush.msra.mxu0 %v1253
        %1277 = vmatpush.msra.mxu0 %v1252
        %1278 = vmatpush.msra.mxu0 %v1251
        %1279 = vmatpush.msra.mxu0 %v1250
        %1280 = vmatmul.f32.gmra.mxu0 %v1259
        %v1281 = vpop.f32.mrf.mxu0
        %v1282 = vadd.f32 0.0, %v1281
        %1283 = vmatmul.f32.gmra.mxu0 %v1262
        %v1284 = vpop.f32.mrf.mxu0
        %v1285 = vadd.f32 0.0, %v1284
        %1286 = vdwg.mxu0
        %v1288 = vsel %vm1229, %v1234, 0
        %v1291 = vsel %vm1229, %v1236, 0
        %1293 = vmatpush.msra.mxu0 0.0
        %1294 = vmatpush.msra.mxu0 0.0
        %1295 = vmatpush.msra.mxu0 0.0
        %1296 = vmatpush.msra.mxu0 0.0
        %1297 = vmatpush.msra.mxu0 0.0
        %1298 = vmatpush.msra.mxu0 0.0
        %1299 = vmatpush.msra.mxu0 0.0
        %1300 = vmatpush.msra.mxu0 0.0
        %1301 = vmatpush.msra.mxu0 %v1244
        %1302 = vmatpush.msra.mxu0 %v1243
        %1303 = vmatpush.msra.mxu0 %v1242
        %1304 = vmatpush.msra.mxu0 %v1241
        %1305 = vmatpush.msra.mxu0 %v1240
        %1306 = vmatpush.msra.mxu0 %v1239
        %1307 = vmatpush.msra.mxu0 %v1238
        %1308 = vmatpush.msra.mxu0 %v1237
        %1309 = vmatmul.f32.gmra.mxu0 %v1288
        %v1310 = vpop.f32.mrf.mxu0
        %v1311 = vadd.f32 %v1282, %v1310
        %1312 = vmatmul.f32.gmra.mxu0 %v1291
        %v1313 = vpop.f32.mrf.mxu0
        %v1314 = vadd.f32 %v1285, %v1313
        %1315 = vdwg.mxu0
        %s1316 = scalar_lea.vmem [#allocation5], 2
        %v1317 = vld [vmem:[%s1316] ss:$2 sm:$0xff]
        %s1318 = scalar_lea.vmem [#allocation5], 18
        %v1319 = vld [vmem:[%s1318] ss:$2 sm:$0xff]
        %v1321 = vsel %vm1229, %v1317, 0
        %v1324 = vsel %vm1229, %v1319, 0
        %1326 = vmatpush.msra.mxu0 0.0
        %1327 = vmatpush.msra.mxu0 0.0
        %1328 = vmatpush.msra.mxu0 0.0
        %1329 = vmatpush.msra.mxu0 0.0
        %1330 = vmatpush.msra.mxu0 0.0
        %1331 = vmatpush.msra.mxu0 0.0
        %1332 = vmatpush.msra.mxu0 0.0
        %1333 = vmatpush.msra.mxu0 0.0
        %1334 = vmatpush.msra.mxu0 %v1257
        %1335 = vmatpush.msra.mxu0 %v1256
        %1336 = vmatpush.msra.mxu0 %v1255
        %1337 = vmatpush.msra.mxu0 %v1254
        %1338 = vmatpush.msra.mxu0 %v1253
        %1339 = vmatpush.msra.mxu0 %v1252
        %1340 = vmatpush.msra.mxu0 %v1251
        %1341 = vmatpush.msra.mxu0 %v1250
        %1342 = vmatmul.f32.gmra.mxu0 %v1321
        %v1343 = vpop.f32.mrf.mxu0
        %v1344 = vadd.f32 0.0, %v1343
        %1345 = vmatmul.f32.gmra.mxu0 %v1324
        %v1346 = vpop.f32.mrf.mxu0
        %v1347 = vadd.f32 0.0, %v1346
        %1348 = vdwg.mxu0
        %1349 = vmatpush.msra.mxu0 0.0
        %1350 = vmatpush.msra.mxu0 0.0
        %1351 = vmatpush.msra.mxu0 0.0
        %1352 = vmatpush.msra.mxu0 0.0
        %1353 = vmatpush.msra.mxu0 0.0
        %1354 = vmatpush.msra.mxu0 0.0
        %1355 = vmatpush.msra.mxu0 0.0
        %1356 = vmatpush.msra.mxu0 0.0
        %1357 = vmatpush.msra.mxu0 %v1244
        %1358 = vmatpush.msra.mxu0 %v1243
        %1359 = vmatpush.msra.mxu0 %v1242
        %1360 = vmatpush.msra.mxu0 %v1241
        %1361 = vmatpush.msra.mxu0 %v1240
        %1362 = vmatpush.msra.mxu0 %v1239
        %1363 = vmatpush.msra.mxu0 %v1238
        %1364 = vmatpush.msra.mxu0 %v1237
        %1365 = vmatmul.f32.gmra.mxu0 %v1259
        %v1366 = vpop.f32.mrf.mxu0
        %v1367 = vadd.f32 %v1344, %v1366
        %1368 = vmatmul.f32.gmra.mxu0 %v1262
        %v1369 = vpop.f32.mrf.mxu0
        %v1370 = vadd.f32 %v1347, %v1369
        %1371 = vdwg.mxu0
        %s1372 = scalar_lea.vmem [#allocation11], 128
        %v1373 = vld [vmem:[%s1372] sm:$0xff]
        %v1374 = vld [vmem:[%s1372 + $0x8] sm:$0xff]
        %v1375 = vld [vmem:[%s1372 + $0x10] sm:$0xff]
        %v1376 = vld [vmem:[%s1372 + $0x18] sm:$0xff]
        %v1377 = vld [vmem:[%s1372 + $0x20] sm:$0xff]
        %v1378 = vld [vmem:[%s1372 + $0x28] sm:$0xff]
        %v1379 = vld [vmem:[%s1372 + $0x30] sm:$0xff]
        %v1380 = vld [vmem:[%s1372 + $0x38] sm:$0xff]
        %1381 = vmatpush.msra.mxu0 0.0
        %1382 = vmatpush.msra.mxu0 0.0
        %1383 = vmatpush.msra.mxu0 0.0
        %1384 = vmatpush.msra.mxu0 0.0
        %1385 = vmatpush.msra.mxu0 0.0
        %1386 = vmatpush.msra.mxu0 0.0
        %1387 = vmatpush.msra.mxu0 0.0
        %1388 = vmatpush.msra.mxu0 0.0
        %1389 = vmatpush.msra.mxu0 %v1380
        %1390 = vmatpush.msra.mxu0 %v1379
        %1391 = vmatpush.msra.mxu0 %v1378
        %1392 = vmatpush.msra.mxu0 %v1377
        %1393 = vmatpush.msra.mxu0 %v1376
        %1394 = vmatpush.msra.mxu0 %v1375
        %1395 = vmatpush.msra.mxu0 %v1374
        %1396 = vmatpush.msra.mxu0 %v1373
        %1397 = vmatmul.f32.gmra.mxu0 %v1321
        %v1398 = vpop.f32.mrf.mxu0
        %v1399 = vadd.f32 0.0, %v1398
        %1400 = vmatmul.f32.gmra.mxu0 %v1324
        %v1401 = vpop.f32.mrf.mxu0
        %v1402 = vadd.f32 0.0, %v1401
        %1403 = vdwg.mxu0
        %v1404 = vadd.f32 %v1311, %v1399
        %v1405 = vadd.f32 %v1314, %v1402
        %s1406 = scalar_lea.vmem [#allocation5], 3
        %v1407 = vld [vmem:[%s1406] ss:$2 sm:$0xff]
        %s1408 = scalar_lea.vmem [#allocation5], 19
        %v1409 = vld [vmem:[%s1408] ss:$2 sm:$0xff]
        %v1411 = vsel %vm1229, %v1407, 0
        %v1414 = vsel %vm1229, %v1409, 0
        %1416 = vmatpush.msra.mxu0 0.0
        %1417 = vmatpush.msra.mxu0 0.0
        %1418 = vmatpush.msra.mxu0 0.0
        %1419 = vmatpush.msra.mxu0 0.0
        %1420 = vmatpush.msra.mxu0 0.0
        %1421 = vmatpush.msra.mxu0 0.0
        %1422 = vmatpush.msra.mxu0 0.0
        %1423 = vmatpush.msra.mxu0 0.0
        %1424 = vmatpush.msra.mxu0 %v1380
        %1425 = vmatpush.msra.mxu0 %v1379
        %1426 = vmatpush.msra.mxu0 %v1378
        %1427 = vmatpush.msra.mxu0 %v1377
        %1428 = vmatpush.msra.mxu0 %v1376
        %1429 = vmatpush.msra.mxu0 %v1375
        %1430 = vmatpush.msra.mxu0 %v1374
        %1431 = vmatpush.msra.mxu0 %v1373
        %1432 = vmatmul.f32.gmra.mxu0 %v1411
        %v1433 = vpop.f32.mrf.mxu0
        %v1434 = vadd.f32 0.0, %v1433
        %1435 = vmatmul.f32.gmra.mxu0 %v1414
        %v1436 = vpop.f32.mrf.mxu0
        %v1437 = vadd.f32 0.0, %v1436
        %1438 = vdwg.mxu0
        %v1439 = vadd.f32 %v1367, %v1434
        %v1440 = vadd.f32 %v1370, %v1437
        %v1441 = vmax.f32 %v1404, %v1439
        %v1442 = vmax.f32 %v1405, %v1440
        %v1443 = vld [vmem:[%s8] sm:$0x1]
        %v1445 = vperm.slane %v1443, 0
        %v1447 = vadd.f32 %v1441, %v1445
        %v1448 = vadd.f32 %v1442, %v1445
        %v1449 = vmax.f32 %v1447, 0.0
        %v1450 = vmax.f32 %v1448, 0.0
        %1451 = vst.msk [vmem:[#allocation6] sm:$0x1] %vm1226, 0.0
        %1452 = vst.msk [vmem:[#allocation6 + $0x11] sm:$0x1] %vm1226, 0.0
        %1453 = vst.msk [vmem:[#allocation6 + $0x1] sm:$0xff] %vm1229, %v1449
        %1454 = vst.msk [vmem:[#allocation6 + $0x9] sm:$0xff] %vm1229, %v1450
        %v1455 = vld [vmem:[#allocation6] ss:$2 sm:$0xff]
        %v1456 = vld [vmem:[#allocation13] sm:$0xff]
        %v1457 = vld [vmem:[#allocation13 + $0x8] sm:$0xff]
        %v1458 = vld [vmem:[#allocation13 + $0x10] sm:$0xff]
        %v1459 = vld [vmem:[#allocation13 + $0x18] sm:$0xff]
        %v1460 = vld [vmem:[#allocation13 + $0x20] sm:$0xff]
        %v1461 = vld [vmem:[#allocation13 + $0x28] sm:$0xff]
        %v1462 = vld [vmem:[#allocation13 + $0x30] sm:$0xff]
        %v1463 = vld [vmem:[#allocation13 + $0x38] sm:$0xff]
        %s1464 = scalar_lea.vmem [#allocation6], 1
        %v1465 = vld [vmem:[%s1464] ss:$2 sm:$0xff]
        %s1466 = scalar_lea.vmem [#allocation13], 64
        %v1467 = vld [vmem:[%s1466] sm:$0xff]
        %v1468 = vld [vmem:[%s1466 + $0x8] sm:$0xff]
        %v1469 = vld [vmem:[%s1466 + $0x10] sm:$0xff]
        %v1470 = vld [vmem:[%s1466 + $0x18] sm:$0xff]
        %v1471 = vld [vmem:[%s1466 + $0x20] sm:$0xff]
        %v1472 = vld [vmem:[%s1466 + $0x28] sm:$0xff]
        %v1473 = vld [vmem:[%s1466 + $0x30] sm:$0xff]
        %v1474 = vld [vmem:[%s1466 + $0x38] sm:$0xff]
        %v1476 = vsel %vm1229, %v1465, 0
        %1478 = vmatpush.msra.mxu0 0.0
        %1479 = vmatpush.msra.mxu0 0.0
        %1480 = vmatpush.msra.mxu0 0.0
        %1481 = vmatpush.msra.mxu0 0.0
        %1482 = vmatpush.msra.mxu0 0.0
        %1483 = vmatpush.msra.mxu0 0.0
        %1484 = vmatpush.msra.mxu0 0.0
        %1485 = vmatpush.msra.mxu0 0.0
        %1486 = vmatpush.msra.mxu0 %v1474
        %1487 = vmatpush.msra.mxu0 %v1473
        %1488 = vmatpush.msra.mxu0 %v1472
        %1489 = vmatpush.msra.mxu0 %v1471
        %1490 = vmatpush.msra.mxu0 %v1470
        %1491 = vmatpush.msra.mxu0 %v1469
        %1492 = vmatpush.msra.mxu0 %v1468
        %1493 = vmatpush.msra.mxu0 %v1467
        %1494 = vmatmul.f32.gmra.mxu0 %v1476
        %v1495 = vpop.f32.mrf.mxu0
        %v1496 = vadd.f32 0.0, %v1495
        %1497 = vdwg.mxu0
        %v1499 = vsel %vm1229, %v1455, 0
        %1501 = vmatpush.msra.mxu0 0.0
        %1502 = vmatpush.msra.mxu0 0.0
        %1503 = vmatpush.msra.mxu0 0.0
        %1504 = vmatpush.msra.mxu0 0.0
        %1505 = vmatpush.msra.mxu0 0.0
        %1506 = vmatpush.msra.mxu0 0.0
        %1507 = vmatpush.msra.mxu0 0.0
        %1508 = vmatpush.msra.mxu0 0.0
        %1509 = vmatpush.msra.mxu0 %v1463
        %1510 = vmatpush.msra.mxu0 %v1462
        %1511 = vmatpush.msra.mxu0 %v1461
        %1512 = vmatpush.msra.mxu0 %v1460
        %1513 = vmatpush.msra.mxu0 %v1459
        %1514 = vmatpush.msra.mxu0 %v1458
        %1515 = vmatpush.msra.mxu0 %v1457
        %1516 = vmatpush.msra.mxu0 %v1456
        %1517 = vmatmul.f32.gmra.mxu0 %v1499
        %v1518 = vpop.f32.mrf.mxu0
        %v1519 = vadd.f32 %v1496, %v1518
        %1520 = vdwg.mxu0
        %s1521 = scalar_lea.vmem [#allocation6], 2
        %v1522 = vld [vmem:[%s1521] ss:$2 sm:$0xff]
        %v1524 = vsel %vm1229, %v1522, 0
        %1526 = vmatpush.msra.mxu0 0.0
        %1527 = vmatpush.msra.mxu0 0.0
        %1528 = vmatpush.msra.mxu0 0.0
        %1529 = vmatpush.msra.mxu0 0.0
        %1530 = vmatpush.msra.mxu0 0.0
        %1531 = vmatpush.msra.mxu0 0.0
        %1532 = vmatpush.msra.mxu0 0.0
        %1533 = vmatpush.msra.mxu0 0.0
        %1534 = vmatpush.msra.mxu0 %v1474
        %1535 = vmatpush.msra.mxu0 %v1473
        %1536 = vmatpush.msra.mxu0 %v1472
        %1537 = vmatpush.msra.mxu0 %v1471
        %1538 = vmatpush.msra.mxu0 %v1470
        %1539 = vmatpush.msra.mxu0 %v1469
        %1540 = vmatpush.msra.mxu0 %v1468
        %1541 = vmatpush.msra.mxu0 %v1467
        %1542 = vmatmul.f32.gmra.mxu0 %v1524
        %v1543 = vpop.f32.mrf.mxu0
        %v1544 = vadd.f32 0.0, %v1543
        %1545 = vdwg.mxu0
        %1546 = vmatpush.msra.mxu0 0.0
        %1547 = vmatpush.msra.mxu0 0.0
        %1548 = vmatpush.msra.mxu0 0.0
        %1549 = vmatpush.msra.mxu0 0.0
        %1550 = vmatpush.msra.mxu0 0.0
        %1551 = vmatpush.msra.mxu0 0.0
        %1552 = vmatpush.msra.mxu0 0.0
        %1553 = vmatpush.msra.mxu0 0.0
        %1554 = vmatpush.msra.mxu0 %v1463
        %1555 = vmatpush.msra.mxu0 %v1462
        %1556 = vmatpush.msra.mxu0 %v1461
        %1557 = vmatpush.msra.mxu0 %v1460
        %1558 = vmatpush.msra.mxu0 %v1459
        %1559 = vmatpush.msra.mxu0 %v1458
        %1560 = vmatpush.msra.mxu0 %v1457
        %1561 = vmatpush.msra.mxu0 %v1456
        %1562 = vmatmul.f32.gmra.mxu0 %v1476
        %v1563 = vpop.f32.mrf.mxu0
        %v1564 = vadd.f32 %v1544, %v1563
        %1565 = vdwg.mxu0
        %s1566 = scalar_lea.vmem [#allocation13], 128
        %v1567 = vld [vmem:[%s1566] sm:$0xff]
        %v1568 = vld [vmem:[%s1566 + $0x8] sm:$0xff]
        %v1569 = vld [vmem:[%s1566 + $0x10] sm:$0xff]
        %v1570 = vld [vmem:[%s1566 + $0x18] sm:$0xff]
        %v1571 = vld [vmem:[%s1566 + $0x20] sm:$0xff]
        %v1572 = vld [vmem:[%s1566 + $0x28] sm:$0xff]
        %v1573 = vld [vmem:[%s1566 + $0x30] sm:$0xff]
        %v1574 = vld [vmem:[%s1566 + $0x38] sm:$0xff]
        %1575 = vmatpush.msra.mxu0 0.0
        %1576 = vmatpush.msra.mxu0 0.0
        %1577 = vmatpush.msra.mxu0 0.0
        %1578 = vmatpush.msra.mxu0 0.0
        %1579 = vmatpush.msra.mxu0 0.0
        %1580 = vmatpush.msra.mxu0 0.0
        %1581 = vmatpush.msra.mxu0 0.0
        %1582 = vmatpush.msra.mxu0 0.0
        %1583 = vmatpush.msra.mxu0 %v1574
        %1584 = vmatpush.msra.mxu0 %v1573
        %1585 = vmatpush.msra.mxu0 %v1572
        %1586 = vmatpush.msra.mxu0 %v1571
        %1587 = vmatpush.msra.mxu0 %v1570
        %1588 = vmatpush.msra.mxu0 %v1569
        %1589 = vmatpush.msra.mxu0 %v1568
        %1590 = vmatpush.msra.mxu0 %v1567
        %1591 = vmatmul.f32.gmra.mxu0 %v1524
        %v1592 = vpop.f32.mrf.mxu0
        %v1593 = vadd.f32 0.0, %v1592
        %1594 = vdwg.mxu0
        %v1595 = vadd.f32 %v1519, %v1593
        %s1596 = scalar_lea.vmem [#allocation6], 3
        %v1597 = vld [vmem:[%s1596] ss:$2 sm:$0xff]
        %v1599 = vsel %vm1229, %v1597, 0
        %1601 = vmatpush.msra.mxu0 0.0
        %1602 = vmatpush.msra.mxu0 0.0
        %1603 = vmatpush.msra.mxu0 0.0
        %1604 = vmatpush.msra.mxu0 0.0
        %1605 = vmatpush.msra.mxu0 0.0
        %1606 = vmatpush.msra.mxu0 0.0
        %1607 = vmatpush.msra.mxu0 0.0
        %1608 = vmatpush.msra.mxu0 0.0
        %1609 = vmatpush.msra.mxu0 %v1574
        %1610 = vmatpush.msra.mxu0 %v1573
        %1611 = vmatpush.msra.mxu0 %v1572
        %1612 = vmatpush.msra.mxu0 %v1571
        %1613 = vmatpush.msra.mxu0 %v1570
        %1614 = vmatpush.msra.mxu0 %v1569
        %1615 = vmatpush.msra.mxu0 %v1568
        %1616 = vmatpush.msra.mxu0 %v1567
        %1617 = vmatmul.f32.gmra.mxu0 %v1599
        %v1618 = vpop.f32.mrf.mxu0
        %v1619 = vadd.f32 0.0, %v1618
        %1620 = vdwg.mxu0
        %v1621 = vadd.f32 %v1564, %v1619
        %v1622 = vmax.f32 %v1595, %v1621
        %v1623 = vld [vmem:[%s10] sm:$0x1]
        %v1625 = vperm.slane %v1623, 0
        %v1627 = vadd.f32 %v1622, %v1625
        %v1628 = vmax.f32 %v1627, 0.0
        %1629 = vst [vmem:[#allocation7] sm:$0x1] 0.0
        %1630 = vst [vmem:[#allocation7 + $0x9] sm:$0x1] 0.0
        %1631 = vst [vmem:[#allocation7 + $0x1] sm:$0xff] %v1628
        %v1632 = vld [vmem:[#allocation7] ss:$2 sm:$0xf]
        %v1633 = vld [vmem:[#allocation14] sm:$0xff]
        %v1634 = vld [vmem:[#allocation14 + $0x8] sm:$0xff]
        %v1635 = vld [vmem:[#allocation14 + $0x10] sm:$0xff]
        %v1636 = vld [vmem:[#allocation14 + $0x18] sm:$0xff]
        %v1637 = vld [vmem:[#allocation14 + $0x20] sm:$0xff]
        %v1638 = vld [vmem:[#allocation14 + $0x28] sm:$0xff]
        %v1639 = vld [vmem:[#allocation14 + $0x30] sm:$0xff]
        %v1640 = vld [vmem:[#allocation14 + $0x38] sm:$0xff]
        %v1641 = vld [vmem:[#allocation14 + $0x40] sm:$0xff]
        %v1642 = vld [vmem:[#allocation14 + $0x48] sm:$0xff]
        %v1643 = vld [vmem:[#allocation14 + $0x50] sm:$0xff]
        %v1644 = vld [vmem:[#allocation14 + $0x58] sm:$0xff]
        %v1645 = vld [vmem:[#allocation14 + $0x60] sm:$0xff]
        %v1646 = vld [vmem:[#allocation14 + $0x68] sm:$0xff]
        %v1647 = vld [vmem:[#allocation14 + $0x70] sm:$0xff]
        %v1648 = vld [vmem:[#allocation14 + $0x78] sm:$0xff]
        %v1649 = vld [vmem:[#allocation14 + $0x80] sm:$0xff]
        %v1650 = vld [vmem:[#allocation14 + $0x88] sm:$0xff]
        %v1651 = vld [vmem:[#allocation14 + $0x90] sm:$0xff]
        %v1652 = vld [vmem:[#allocation14 + $0x98] sm:$0xff]
        %v1653 = vld [vmem:[#allocation14 + $0xa0] sm:$0xff]
        %v1654 = vld [vmem:[#allocation14 + $0xa8] sm:$0xff]
        %v1655 = vld [vmem:[#allocation14 + $0xb0] sm:$0xff]
        %v1656 = vld [vmem:[#allocation14 + $0xb8] sm:$0xff]
        %v1657 = vld [vmem:[#allocation14 + $0xc0] sm:$0xff]
        %v1658 = vld [vmem:[#allocation14 + $0xc8] sm:$0xff]
        %v1659 = vld [vmem:[#allocation14 + $0xd0] sm:$0xff]
        %v1660 = vld [vmem:[#allocation14 + $0xd8] sm:$0xff]
        %v1661 = vld [vmem:[#allocation14 + $0xe0] sm:$0xff]
        %v1662 = vld [vmem:[#allocation14 + $0xe8] sm:$0xff]
        %v1663 = vld [vmem:[#allocation14 + $0xf0] sm:$0xff]
        %v1664 = vld [vmem:[#allocation14 + $0xf8] sm:$0xff]
        %s1665 = scalar_lea.vmem [#allocation7], 1
        %v1666 = vld [vmem:[%s1665] ss:$2 sm:$0xf]
        %s1667 = scalar_lea.vmem [#allocation14], 256
        %v1668 = vld [vmem:[%s1667] sm:$0xff]
        %v1669 = vld [vmem:[%s1667 + $0x8] sm:$0xff]
        %v1670 = vld [vmem:[%s1667 + $0x10] sm:$0xff]
        %v1671 = vld [vmem:[%s1667 + $0x18] sm:$0xff]
        %v1672 = vld [vmem:[%s1667 + $0x20] sm:$0xff]
        %v1673 = vld [vmem:[%s1667 + $0x28] sm:$0xff]
        %v1674 = vld [vmem:[%s1667 + $0x30] sm:$0xff]
        %v1675 = vld [vmem:[%s1667 + $0x38] sm:$0xff]
        %v1676 = vld [vmem:[%s1667 + $0x40] sm:$0xff]
        %v1677 = vld [vmem:[%s1667 + $0x48] sm:$0xff]
        %v1678 = vld [vmem:[%s1667 + $0x50] sm:$0xff]
        %v1679 = vld [vmem:[%s1667 + $0x58] sm:$0xff]
        %v1680 = vld [vmem:[%s1667 + $0x60] sm:$0xff]
        %v1681 = vld [vmem:[%s1667 + $0x68] sm:$0xff]
        %v1682 = vld [vmem:[%s1667 + $0x70] sm:$0xff]
        %v1683 = vld [vmem:[%s1667 + $0x78] sm:$0xff]
        %v1684 = vld [vmem:[%s1667 + $0x80] sm:$0xff]
        %v1685 = vld [vmem:[%s1667 + $0x88] sm:$0xff]
        %v1686 = vld [vmem:[%s1667 + $0x90] sm:$0xff]
        %v1687 = vld [vmem:[%s1667 + $0x98] sm:$0xff]
        %v1688 = vld [vmem:[%s1667 + $0xa0] sm:$0xff]
        %v1689 = vld [vmem:[%s1667 + $0xa8] sm:$0xff]
        %v1690 = vld [vmem:[%s1667 + $0xb0] sm:$0xff]
        %v1691 = vld [vmem:[%s1667 + $0xb8] sm:$0xff]
        %v1692 = vld [vmem:[%s1667 + $0xc0] sm:$0xff]
        %v1693 = vld [vmem:[%s1667 + $0xc8] sm:$0xff]
        %v1694 = vld [vmem:[%s1667 + $0xd0] sm:$0xff]
        %v1695 = vld [vmem:[%s1667 + $0xd8] sm:$0xff]
        %v1696 = vld [vmem:[%s1667 + $0xe0] sm:$0xff]
        %v1697 = vld [vmem:[%s1667 + $0xe8] sm:$0xff]
        %v1698 = vld [vmem:[%s1667 + $0xf0] sm:$0xff]
        %v1699 = vld [vmem:[%s1667 + $0xf8] sm:$0xff]
        %1700 = vmatpush.msra.mxu0 %v1698
        %1701 = vmatpush.msra.mxu0 %v1696
        %1702 = vmatpush.msra.mxu0 %v1694
        %1703 = vmatpush.msra.mxu0 %v1692
        %1704 = vmatpush.msra.mxu0 %v1690
        %1705 = vmatpush.msra.mxu0 %v1688
        %1706 = vmatpush.msra.mxu0 %v1686
        %1707 = vmatpush.msra.mxu0 %v1684
        %1708 = vmatpush.msra.mxu0 %v1682
        %1709 = vmatpush.msra.mxu0 %v1680
        %1710 = vmatpush.msra.mxu0 %v1678
        %1711 = vmatpush.msra.mxu0 %v1676
        %1712 = vmatpush.msra.mxu0 %v1674
        %1713 = vmatpush.msra.mxu0 %v1672
        %1714 = vmatpush.msra.mxu0 %v1670
        %1715 = vmatpush.msra.mxu0 %v1668
        %1716 = vmatmul.f32.gmra.mxu0 %v1666
        %v1717 = vpop.f32.mrf.mxu0
        %v1718 = vadd.f32 0.0, %v1717
        %1719 = vdwg.mxu0
        %1720 = vmatpush.msra.mxu0 %v1699
        %1721 = vmatpush.msra.mxu0 %v1697
        %1722 = vmatpush.msra.mxu0 %v1695
        %1723 = vmatpush.msra.mxu0 %v1693
        %1724 = vmatpush.msra.mxu0 %v1691
        %1725 = vmatpush.msra.mxu0 %v1689
        %1726 = vmatpush.msra.mxu0 %v1687
        %1727 = vmatpush.msra.mxu0 %v1685
        %1728 = vmatpush.msra.mxu0 %v1683
        %1729 = vmatpush.msra.mxu0 %v1681
        %1730 = vmatpush.msra.mxu0 %v1679
        %1731 = vmatpush.msra.mxu0 %v1677
        %1732 = vmatpush.msra.mxu0 %v1675
        %1733 = vmatpush.msra.mxu0 %v1673
        %1734 = vmatpush.msra.mxu0 %v1671
        %1735 = vmatpush.msra.mxu0 %v1669
        %1736 = vmatmul.f32.gmra.mxu0 %v1666
        %v1737 = vpop.f32.mrf.mxu0
        %v1738 = vadd.f32 0.0, %v1737
        %1739 = vdwg.mxu0
        %1740 = vmatpush.msra.mxu0 %v1663
        %1741 = vmatpush.msra.mxu0 %v1661
        %1742 = vmatpush.msra.mxu0 %v1659
        %1743 = vmatpush.msra.mxu0 %v1657
        %1744 = vmatpush.msra.mxu0 %v1655
        %1745 = vmatpush.msra.mxu0 %v1653
        %1746 = vmatpush.msra.mxu0 %v1651
        %1747 = vmatpush.msra.mxu0 %v1649
        %1748 = vmatpush.msra.mxu0 %v1647
        %1749 = vmatpush.msra.mxu0 %v1645
        %1750 = vmatpush.msra.mxu0 %v1643
        %1751 = vmatpush.msra.mxu0 %v1641
        %1752 = vmatpush.msra.mxu0 %v1639
        %1753 = vmatpush.msra.mxu0 %v1637
        %1754 = vmatpush.msra.mxu0 %v1635
        %1755 = vmatpush.msra.mxu0 %v1633
        %1756 = vmatmul.f32.gmra.mxu0 %v1632
        %v1757 = vpop.f32.mrf.mxu0
        %v1758 = vadd.f32 %v1718, %v1757
        %1759 = vdwg.mxu0
        %1760 = vmatpush.msra.mxu0 %v1664
        %1761 = vmatpush.msra.mxu0 %v1662
        %1762 = vmatpush.msra.mxu0 %v1660
        %1763 = vmatpush.msra.mxu0 %v1658
        %1764 = vmatpush.msra.mxu0 %v1656
        %1765 = vmatpush.msra.mxu0 %v1654
        %1766 = vmatpush.msra.mxu0 %v1652
        %1767 = vmatpush.msra.mxu0 %v1650
        %1768 = vmatpush.msra.mxu0 %v1648
        %1769 = vmatpush.msra.mxu0 %v1646
        %1770 = vmatpush.msra.mxu0 %v1644
        %1771 = vmatpush.msra.mxu0 %v1642
        %1772 = vmatpush.msra.mxu0 %v1640
        %1773 = vmatpush.msra.mxu0 %v1638
        %1774 = vmatpush.msra.mxu0 %v1636
        %1775 = vmatpush.msra.mxu0 %v1634
        %1776 = vmatmul.f32.gmra.mxu0 %v1632
        %v1777 = vpop.f32.mrf.mxu0
        %v1778 = vadd.f32 %v1738, %v1777
        %1779 = vdwg.mxu0
        %s1780 = scalar_lea.vmem [#allocation7], 2
        %v1781 = vld [vmem:[%s1780] ss:$2 sm:$0xf]
        %1782 = vmatpush.msra.mxu0 %v1698
        %1783 = vmatpush.msra.mxu0 %v1696
        %1784 = vmatpush.msra.mxu0 %v1694
        %1785 = vmatpush.msra.mxu0 %v1692
        %1786 = vmatpush.msra.mxu0 %v1690
        %1787 = vmatpush.msra.mxu0 %v1688
        %1788 = vmatpush.msra.mxu0 %v1686
        %1789 = vmatpush.msra.mxu0 %v1684
        %1790 = vmatpush.msra.mxu0 %v1682
        %1791 = vmatpush.msra.mxu0 %v1680
        %1792 = vmatpush.msra.mxu0 %v1678
        %1793 = vmatpush.msra.mxu0 %v1676
        %1794 = vmatpush.msra.mxu0 %v1674
        %1795 = vmatpush.msra.mxu0 %v1672
        %1796 = vmatpush.msra.mxu0 %v1670
        %1797 = vmatpush.msra.mxu0 %v1668
        %1798 = vmatmul.f32.gmra.mxu0 %v1781
        %v1799 = vpop.f32.mrf.mxu0
        %v1800 = vadd.f32 0.0, %v1799
        %1801 = vdwg.mxu0
        %1802 = vmatpush.msra.mxu0 %v1699
        %1803 = vmatpush.msra.mxu0 %v1697
        %1804 = vmatpush.msra.mxu0 %v1695
        %1805 = vmatpush.msra.mxu0 %v1693
        %1806 = vmatpush.msra.mxu0 %v1691
        %1807 = vmatpush.msra.mxu0 %v1689
        %1808 = vmatpush.msra.mxu0 %v1687
        %1809 = vmatpush.msra.mxu0 %v1685
        %1810 = vmatpush.msra.mxu0 %v1683
        %1811 = vmatpush.msra.mxu0 %v1681
        %1812 = vmatpush.msra.mxu0 %v1679
        %1813 = vmatpush.msra.mxu0 %v1677
        %1814 = vmatpush.msra.mxu0 %v1675
        %1815 = vmatpush.msra.mxu0 %v1673
        %1816 = vmatpush.msra.mxu0 %v1671
        %1817 = vmatpush.msra.mxu0 %v1669
        %1818 = vmatmul.f32.gmra.mxu0 %v1781
        %v1819 = vpop.f32.mrf.mxu0
        %v1820 = vadd.f32 0.0, %v1819
        %1821 = vdwg.mxu0
        %1822 = vmatpush.msra.mxu0 %v1663
        %1823 = vmatpush.msra.mxu0 %v1661
        %1824 = vmatpush.msra.mxu0 %v1659
        %1825 = vmatpush.msra.mxu0 %v1657
        %1826 = vmatpush.msra.mxu0 %v1655
        %1827 = vmatpush.msra.mxu0 %v1653
        %1828 = vmatpush.msra.mxu0 %v1651
        %1829 = vmatpush.msra.mxu0 %v1649
        %1830 = vmatpush.msra.mxu0 %v1647
        %1831 = vmatpush.msra.mxu0 %v1645
        %1832 = vmatpush.msra.mxu0 %v1643
        %1833 = vmatpush.msra.mxu0 %v1641
        %1834 = vmatpush.msra.mxu0 %v1639
        %1835 = vmatpush.msra.mxu0 %v1637
        %1836 = vmatpush.msra.mxu0 %v1635
        %1837 = vmatpush.msra.mxu0 %v1633
        %1838 = vmatmul.f32.gmra.mxu0 %v1666
        %v1839 = vpop.f32.mrf.mxu0
        %v1840 = vadd.f32 %v1800, %v1839
        %1841 = vdwg.mxu0
        %1842 = vmatpush.msra.mxu0 %v1664
        %1843 = vmatpush.msra.mxu0 %v1662
        %1844 = vmatpush.msra.mxu0 %v1660
        %1845 = vmatpush.msra.mxu0 %v1658
        %1846 = vmatpush.msra.mxu0 %v1656
        %1847 = vmatpush.msra.mxu0 %v1654
        %1848 = vmatpush.msra.mxu0 %v1652
        %1849 = vmatpush.msra.mxu0 %v1650
        %1850 = vmatpush.msra.mxu0 %v1648
        %1851 = vmatpush.msra.mxu0 %v1646
        %1852 = vmatpush.msra.mxu0 %v1644
        %1853 = vmatpush.msra.mxu0 %v1642
        %1854 = vmatpush.msra.mxu0 %v1640
        %1855 = vmatpush.msra.mxu0 %v1638
        %1856 = vmatpush.msra.mxu0 %v1636
        %1857 = vmatpush.msra.mxu0 %v1634
        %1858 = vmatmul.f32.gmra.mxu0 %v1666
        %v1859 = vpop.f32.mrf.mxu0
        %v1860 = vadd.f32 %v1820, %v1859
        %1861 = vdwg.mxu0
        %s1862 = scalar_lea.vmem [#allocation14], 512
        %v1863 = vld [vmem:[%s1862] sm:$0xff]
        %v1864 = vld [vmem:[%s1862 + $0x8] sm:$0xff]
        %v1865 = vld [vmem:[%s1862 + $0x10] sm:$0xff]
        %v1866 = vld [vmem:[%s1862 + $0x18] sm:$0xff]
        %v1867 = vld [vmem:[%s1862 + $0x20] sm:$0xff]
        %v1868 = vld [vmem:[%s1862 + $0x28] sm:$0xff]
        %v1869 = vld [vmem:[%s1862 + $0x30] sm:$0xff]
        %v1870 = vld [vmem:[%s1862 + $0x38] sm:$0xff]
        %v1871 = vld [vmem:[%s1862 + $0x40] sm:$0xff]
        %v1872 = vld [vmem:[%s1862 + $0x48] sm:$0xff]
        %v1873 = vld [vmem:[%s1862 + $0x50] sm:$0xff]
        %v1874 = vld [vmem:[%s1862 + $0x58] sm:$0xff]
        %v1875 = vld [vmem:[%s1862 + $0x60] sm:$0xff]
        %v1876 = vld [vmem:[%s1862 + $0x68] sm:$0xff]
        %v1877 = vld [vmem:[%s1862 + $0x70] sm:$0xff]
        %v1878 = vld [vmem:[%s1862 + $0x78] sm:$0xff]
        %v1879 = vld [vmem:[%s1862 + $0x80] sm:$0xff]
        %v1880 = vld [vmem:[%s1862 + $0x88] sm:$0xff]
        %v1881 = vld [vmem:[%s1862 + $0x90] sm:$0xff]
        %v1882 = vld [vmem:[%s1862 + $0x98] sm:$0xff]
        %v1883 = vld [vmem:[%s1862 + $0xa0] sm:$0xff]
        %v1884 = vld [vmem:[%s1862 + $0xa8] sm:$0xff]
        %v1885 = vld [vmem:[%s1862 + $0xb0] sm:$0xff]
        %v1886 = vld [vmem:[%s1862 + $0xb8] sm:$0xff]
        %v1887 = vld [vmem:[%s1862 + $0xc0] sm:$0xff]
        %v1888 = vld [vmem:[%s1862 + $0xc8] sm:$0xff]
        %v1889 = vld [vmem:[%s1862 + $0xd0] sm:$0xff]
        %v1890 = vld [vmem:[%s1862 + $0xd8] sm:$0xff]
        %v1891 = vld [vmem:[%s1862 + $0xe0] sm:$0xff]
        %v1892 = vld [vmem:[%s1862 + $0xe8] sm:$0xff]
        %v1893 = vld [vmem:[%s1862 + $0xf0] sm:$0xff]
        %v1894 = vld [vmem:[%s1862 + $0xf8] sm:$0xff]
        %1895 = vmatpush.msra.mxu0 %v1893
        %1896 = vmatpush.msra.mxu0 %v1891
        %1897 = vmatpush.msra.mxu0 %v1889
        %1898 = vmatpush.msra.mxu0 %v1887
        %1899 = vmatpush.msra.mxu0 %v1885
        %1900 = vmatpush.msra.mxu0 %v1883
        %1901 = vmatpush.msra.mxu0 %v1881
        %1902 = vmatpush.msra.mxu0 %v1879
        %1903 = vmatpush.msra.mxu0 %v1877
        %1904 = vmatpush.msra.mxu0 %v1875
        %1905 = vmatpush.msra.mxu0 %v1873
        %1906 = vmatpush.msra.mxu0 %v1871
        %1907 = vmatpush.msra.mxu0 %v1869
        %1908 = vmatpush.msra.mxu0 %v1867
        %1909 = vmatpush.msra.mxu0 %v1865
        %1910 = vmatpush.msra.mxu0 %v1863
        %1911 = vmatmul.f32.gmra.mxu0 %v1781
        %v1912 = vpop.f32.mrf.mxu0
        %v1913 = vadd.f32 0.0, %v1912
        %1914 = vdwg.mxu0
        %1915 = vmatpush.msra.mxu0 %v1894
        %1916 = vmatpush.msra.mxu0 %v1892
        %1917 = vmatpush.msra.mxu0 %v1890
        %1918 = vmatpush.msra.mxu0 %v1888
        %1919 = vmatpush.msra.mxu0 %v1886
        %1920 = vmatpush.msra.mxu0 %v1884
        %1921 = vmatpush.msra.mxu0 %v1882
        %1922 = vmatpush.msra.mxu0 %v1880
        %1923 = vmatpush.msra.mxu0 %v1878
        %1924 = vmatpush.msra.mxu0 %v1876
        %1925 = vmatpush.msra.mxu0 %v1874
        %1926 = vmatpush.msra.mxu0 %v1872
        %1927 = vmatpush.msra.mxu0 %v1870
        %1928 = vmatpush.msra.mxu0 %v1868
        %1929 = vmatpush.msra.mxu0 %v1866
        %1930 = vmatpush.msra.mxu0 %v1864
        %1931 = vmatmul.f32.gmra.mxu0 %v1781
        %v1932 = vpop.f32.mrf.mxu0
        %v1933 = vadd.f32 0.0, %v1932
        %1934 = vdwg.mxu0
        %v1935 = vadd.f32 %v1758, %v1913
        %v1936 = vadd.f32 %v1778, %v1933
        %s1937 = scalar_lea.vmem [#allocation7], 3
        %v1938 = vld [vmem:[%s1937] ss:$2 sm:$0xf]
        %1939 = vmatpush.msra.mxu0 %v1893
        %1940 = vmatpush.msra.mxu0 %v1891
        %1941 = vmatpush.msra.mxu0 %v1889
        %1942 = vmatpush.msra.mxu0 %v1887
        %1943 = vmatpush.msra.mxu0 %v1885
        %1944 = vmatpush.msra.mxu0 %v1883
        %1945 = vmatpush.msra.mxu0 %v1881
        %1946 = vmatpush.msra.mxu0 %v1879
        %1947 = vmatpush.msra.mxu0 %v1877
        %1948 = vmatpush.msra.mxu0 %v1875
        %1949 = vmatpush.msra.mxu0 %v1873
        %1950 = vmatpush.msra.mxu0 %v1871
        %1951 = vmatpush.msra.mxu0 %v1869
        %1952 = vmatpush.msra.mxu0 %v1867
        %1953 = vmatpush.msra.mxu0 %v1865
        %1954 = vmatpush.msra.mxu0 %v1863
        %1955 = vmatmul.f32.gmra.mxu0 %v1938
        %v1956 = vpop.f32.mrf.mxu0
        %v1957 = vadd.f32 0.0, %v1956
        %1958 = vdwg.mxu0
        %1959 = vmatpush.msra.mxu0 %v1894
        %1960 = vmatpush.msra.mxu0 %v1892
        %1961 = vmatpush.msra.mxu0 %v1890
        %1962 = vmatpush.msra.mxu0 %v1888
        %1963 = vmatpush.msra.mxu0 %v1886
        %1964 = vmatpush.msra.mxu0 %v1884
        %1965 = vmatpush.msra.mxu0 %v1882
        %1966 = vmatpush.msra.mxu0 %v1880
        %1967 = vmatpush.msra.mxu0 %v1878
        %1968 = vmatpush.msra.mxu0 %v1876
        %1969 = vmatpush.msra.mxu0 %v1874
        %1970 = vmatpush.msra.mxu0 %v1872
        %1971 = vmatpush.msra.mxu0 %v1870
        %1972 = vmatpush.msra.mxu0 %v1868
        %1973 = vmatpush.msra.mxu0 %v1866
        %1974 = vmatpush.msra.mxu0 %v1864
        %1975 = vmatmul.f32.gmra.mxu0 %v1938
        %v1976 = vpop.f32.mrf.mxu0
        %v1977 = vadd.f32 0.0, %v1976
        %1978 = vdwg.mxu0
        %v1979 = vadd.f32 %v1840, %v1957
        %v1980 = vadd.f32 %v1860, %v1977
        %v1981 = vmax.f32 %v1935, %v1979
        %v1982 = vmax.f32 %v1936, %v1980
        %v1983 = vld [vmem:[%s12] sm:$0x3]
        %v1985 = vperm.slane %v1983, 0
        %v1986 = vperm.slane %v1983, 1
        %v1989 = vadd.f32 %v1981, %v1985
        %v1990 = vadd.f32 %v1982, %v1986
        %v1991 = vmax.f32 %v1989, 0.0
        %v1992 = vmax.f32 %v1990, 0.0
        %v1995 = vrot.slane %v1992, 4
        %vm1996 = vcmask 1043456
        %v1997 = vsel %vm1996, %v1991, %v1995
        %1999 = vst [vmem:[%s500] sm:$0xff] %v1997
        %s2000 = sand.u32 %s316, 1
        %s2001 = scalar_lea.sflag [#allocation10], %s2000
        %s2002 = sand.u32 %s316, 1
        %s2003 = smul.addr %s2002, 8
        %s2004 = scalar_lea.vmem [#allocation16], %s2003
        // Predicated region
        $region89: #{_lambda_.1} parent=71 // pred_check
          %p2005 = pneg %p326
        $region90: #{_lambda_.1} parent=71 // pred_check_branch
          %2007 = sbr.rel (%p2005) target = $region92
        $region91: #{_lambda_.1} parent=71 // pred_region
          %2009 = vsyncadd %s2001, 0
          %s2010 = smul.addr %s30, 2
          %s2011 = smul.addr %s2010, 4
          %s2012 = scalar_lea.hbm %s13, %s2011
          %s2014 = sshll.u32 %s2004, 4
          %s2015 = int_to_ptr.vmem [resolvable:$true] %s2014
          %s2016 = sshll.u32 %s2012, 4
          %s2017 = int_to_ptr.hbm [resolvable:$true] %s2016
          %2019 = dma.vmem_to_hbm [thread:$0]  %s2015, 128, %s2017, %s2001
        $region92: #{_lambda_.1} parent=71 // pred_fallthru
          _
      $region72: #{_lambda_.1} parent=5 // pred_fallthru
        _
      %p2020 = scmp.le.s32.totalorder 2, %s25
      // Predicated region
      $region93: #{_lambda_.1} parent=5 // pred_check
        %p2021 = pneg %p2020
      $region94: #{_lambda_.1} parent=5 // pred_check_branch
        %2023 = sbr.rel (%p2021) target = $region96
      $region95: #{_lambda_.1} parent=5 // pred_region
        %s2024 = ssub.s32 %s25, 2
        // Predicated region
        $region97: #{_lambda_.1} parent=95 // pred_check
          %p2025 = pneg %p332
        $region98: #{_lambda_.1} parent=95 // pred_check_branch
          %2027 = sbr.rel (%p2025) target = $region100
        $region99: #{_lambda_.1} parent=95 // pred_region
          %s2028 = sand.u32 %s317, 1
          %s2029 = scalar_lea.sflag [#allocation10], %s2028
          %s2030 = sand.u32 %s317, 1
          %s2031 = smul.addr %s2030, 8
          %s2032 = scalar_lea.vmem [#allocation16], %s2031
          %2034 = dma.done %s2029, 128
        $region100: #{_lambda_.1} parent=95 // pred_fallthru
          _
      $region96: #{_lambda_.1} parent=5 // pred_fallthru
        _
    $region6: #{_lambda_.1} parent=1 // loop_footer
      %s29 = sadd.s32 1, %s25
    $region7: #{_lambda_.1} parent=1 // loop_footer_branch
      %24 = sbr.rel target = $region3
    $region8: #{_lambda_.1} parent=1 // loop_exit
      _
    %2035 = vsyncpa [#allocation9], 1
    %s2036 = scalar_lea.sflag [#allocation9], 1
    %2037 = vsyncpa %s2036, 1
    %2038 = vsyncpa [#allocation12], 1
    %2039 = vsyncpa [#allocation15], 1
    %2040 = vsyncpa [#allocation10], 1
    %s2041 = scalar_lea.sflag [#allocation10], 1
    %2042 = vsyncpa %s2041, 1

</llo_original>
